<compile_context>
chip_gen: v6e
topology: v6e:2x2x1
jax: 0.10.0
libtpu: 0.0.40
codegen_flags: <defaults>
</compile_context>

<pallas_src>
import math
import functools

import jax
import jax.numpy as jnp
from jax.experimental import pallas as pl
from jax.experimental.pallas import tpu as pltpu


def _mha_kernel(q_ref, k_ref, v_ref,
                wq_ref, bq_ref, wk_ref, bk_ref, wv_ref, bv_ref,
                wo_ref, bo_ref,
                o_ref,
                acc_ref, kc_ref, vc_ref,
                *, d_k, group_size, approx_recip):
    """Grid = (batch, q_tile, head_group); the head-group axis accumulates.

    Ref shapes per grid step (Gd = group_size * d_k, n_hg = H / group_size):
      q_ref                : (1, TQ, D)        compute dtype
      k_ref / v_ref        : (1, S,  D)        compute dtype (DMA only on batch change)
      wq/wk/wv_ref         : (n_hg, D, Gd)     compute dtype (resident, DMA'd once)
      bq/bk/bv_ref         : (n_hg, 1, Gd)     float32
      wo_ref               : (n_hg, Gd, D)     compute dtype (resident)
      bo_ref               : (1, D)            float32
      o_ref                : (1, TQ, D)
      acc_ref   (scratch)  : (TQ, D)           float32   output accumulator
      kc/vc_ref (scratch)  : (n_hg, S, Gd)     compute dtype  projected-K/V cache
    """
    qi = pl.program_id(1)
    hg = pl.program_id(2)

    @pl.when(hg == 0)
    def _init():
        acc_ref[...] = jnp.zeros_like(acc_ref)

    q_in = q_ref[0]                                   # (TQ, D)
    cdtype = q_in.dtype
    scale = 1.0 / math.sqrt(d_k)

    # --- K/V projections: once per (batch, head group), cached across q tiles.
    @pl.when(qi == 0)
    def _project_kv():
        k_in = k_ref[0]                               # (S, D)
        v_in = v_ref[0]
        wk = wk_ref[hg]                               # (D, Gd) wide matmul
        wv = wv_ref[hg]
        kh = jnp.dot(k_in, wk, preferred_element_type=jnp.float32) + bk_ref[hg]
        vh = jnp.dot(v_in, wv, preferred_element_type=jnp.float32) + bv_ref[hg]
        kc_ref[hg] = kh.astype(cdtype)
        vc_ref[hg] = vh.astype(cdtype)

    # --- Q projection for this (q tile, head group): one wide (D, Gd) matmul.
    # 1/sqrt(d_k) is folded here instead of into the (TQ, S) scores.
    wq = wq_ref[hg]                                   # (D, Gd)
    qh = ((jnp.dot(q_in, wq, preferred_element_type=jnp.float32)
           + bq_ref[hg]) * scale).astype(cdtype)      # (TQ, Gd)

    kh = kc_ref[hg]                                   # (S, Gd) compute dtype
    vh = vc_ref[hg]                                   # (S, Gd)

    # --- Per-head attention inside the group (static loop, static lane windows).
    ctx_parts = []
    for g in range(group_size):
        lo, hi = g * d_k, (g + 1) * d_k
        q_h = qh[:, lo:hi]                            # (TQ, d_k)
        k_h = kh[:, lo:hi]                            # (S,  d_k)
        v_h = vh[:, lo:hi]                            # (S,  d_k)
        # scores = q_h @ k_h^T without materializing the transpose.
        s_h = jax.lax.dot_general(
            q_h, k_h, dimension_numbers=(((1,), (1,)), ((), ())),
            preferred_element_type=jnp.float32)       # (TQ, S)
        m = jnp.max(s_h, axis=-1, keepdims=True)
        e = jnp.exp(s_h - m)
        denom = jnp.sum(e, axis=-1, keepdims=True)
        if approx_recip:
            p = e * pl.reciprocal(denom, approx=True)  # EUP; bf16 path only
        else:
            p = e / denom                              # exact for f32 compute
        ctx_parts.append(jnp.dot(p.astype(cdtype), v_h,
                                 preferred_element_type=jnp.float32))  # (TQ, d_k)

    ctx = ctx_parts[0] if group_size == 1 else jnp.concatenate(ctx_parts, axis=-1)

    # --- combine_heads + W_o fused into the head-group reduction:
    # one wide (TQ, Gd) x (Gd, D) matmul accumulated in f32.
    wo = wo_ref[hg]                                   # (Gd, D)
    acc_ref[...] += jnp.dot(ctx.astype(cdtype), wo,
                            preferred_element_type=jnp.float32)

    @pl.when(hg == pl.num_programs(2) - 1)
    def _finalize():
        o_ref[0] = (acc_ref[...] + bo_ref[...]).astype(o_ref.dtype)


def _pick_q_block(S):
    for t in (512, 256, 128):
        if S % t == 0:
            return t
    return S


def _pick_head_group(num_heads, d_k, target_lanes=128):
    """Smallest divisor g of num_heads with g*d_k >= min(target_lanes, D)."""
    target = min(target_lanes, num_heads * d_k)
    for g in range(1, num_heads + 1):
        if num_heads % g == 0 and g * d_k >= target:
            return g
    return num_heads


def _default_vmem_limit():
    """~3/4 of physical per-core VMEM (96 MiB v5e/v6e, 48 MiB v7x)."""
    cap = 128 * 1024 * 1024
    try:
        cap = int(pltpu.get_tpu_info().vmem_capacity_bytes)
    except Exception:
        pass
    return max(32 * 1024 * 1024, min((cap * 3) // 4, 112 * 1024 * 1024))


def multi_head_attention(Q, K, V, params, *, num_heads,
                         q_block=None, compute_dtype=jnp.bfloat16):
    """Q, K, V: (B, S, D).  params: dict with wq/bq/wk/bk/wv/bv/wo/bo."""
    B, S, D = Q.shape
    assert D % num_heads == 0, "d_model must be divisible by num_heads"
    d_k = D // num_heads
    out_dtype = Q.dtype

    G = _pick_head_group(num_heads, d_k)      # heads per grid step
    Gd = G * d_k
    n_hg = num_heads // G

    if q_block is None:
        q_block = _pick_q_block(S)
    assert S % q_block == 0, "seq length must be divisible by q_block"
    n_q = S // q_block

    approx_recip = jnp.dtype(compute_dtype) != jnp.dtype(jnp.float32)

    # --- layout plumbing (wrapper-side, essentially free) ---------------------
    # Head-group weight panels so the kernel's projection / W_o matmuls have a
    # Gd-wide (>=128 when possible) minor dimension.
    def col_groups(w):   # (D, D) -> (n_hg, D, Gd): output-column group per step
        return w.reshape(D, n_hg, Gd).transpose(1, 0, 2).astype(compute_dtype)

    wq = col_groups(params["wq"])
    wk = col_groups(params["wk"])
    wv = col_groups(params["wv"])
    wo = params["wo"].reshape(n_hg, Gd, D).astype(compute_dtype)   # input-row group
    bq = params["bq"].reshape(n_hg, 1, Gd).astype(jnp.float32)
    bk = params["bk"].reshape(n_hg, 1, Gd).astype(jnp.float32)
    bv = params["bv"].reshape(n_hg, 1, Gd).astype(jnp.float32)
    bo = params["bo"].reshape(1, D).astype(jnp.float32)

    Qc = Q.astype(compute_dtype)
    Kc = K.astype(compute_dtype)
    Vc = V.astype(compute_dtype)

    grid = (B, n_q, n_hg)

    q_spec  = pl.BlockSpec((1, q_block, D), lambda b, qi, hg: (b, qi, 0))
    # K/V block index only changes with b -> DMA fires once per batch.
    kv_spec = pl.BlockSpec((1, S, D),       lambda b, qi, hg: (b, 0, 0))
    # Full weight stacks, constant index_map -> resident in VMEM, DMA'd once;
    # the head group is selected inside the kernel (w_ref[hg]).
    wp_spec = pl.BlockSpec((n_hg, D, Gd),   lambda b, qi, hg: (0, 0, 0))
    bp_spec = pl.BlockSpec((n_hg, 1, Gd),   lambda b, qi, hg: (0, 0, 0))
    wo_spec = pl.BlockSpec((n_hg, Gd, D),   lambda b, qi, hg: (0, 0, 0))
    bo_spec = pl.BlockSpec((1, D),          lambda b, qi, hg: (0, 0))
    o_spec  = pl.BlockSpec((1, q_block, D), lambda b, qi, hg: (b, qi, 0))

    cd_bytes = jnp.dtype(compute_dtype).itemsize
    cost = pl.CostEstimate(
        # Q/K/V projections + W_o: 8*S*D^2; scores + PV: 4*S^2*D (per batch).
        flops=int(B * (8 * S * D * D + 4 * S * S * D)),
        transcendentals=int(B * num_heads * S * S),
        bytes_accessed=int(3 * B * S * D * cd_bytes                     # Q,K,V
                           + B * S * D * jnp.dtype(out_dtype).itemsize  # output
                           + 4 * D * D * cd_bytes + 4 * D * 4),         # weights once
    )

    kernel = functools.partial(_mha_kernel, d_k=d_k, group_size=G,
                               approx_recip=approx_recip)

    return pl.pallas_call(
        kernel,
        out_shape=jax.ShapeDtypeStruct((B, S, D), out_dtype),
        grid_spec=pltpu.PrefetchScalarGridSpec(
            num_scalar_prefetch=0,
            grid=grid,
            in_specs=[q_spec, kv_spec, kv_spec,
                      wp_spec, bp_spec, wp_spec, bp_spec, wp_spec, bp_spec,
                      wo_spec, bo_spec],
            out_specs=o_spec,
            scratch_shapes=[
                pltpu.VMEM((q_block, D), jnp.float32),       # output accumulator
                pltpu.VMEM((n_hg, S, Gd), compute_dtype),    # projected-K cache
                pltpu.VMEM((n_hg, S, Gd), compute_dtype),    # projected-V cache
            ],
        ),
        # q_tile must be "arbitrary": the projected-K/V cache is filled at
        # qi == 0 and reused by later q tiles (per-core scratch dependency).
        compiler_params=pltpu.CompilerParams(
            dimension_semantics=("parallel", "arbitrary", "arbitrary"),
            vmem_limit_bytes=_default_vmem_limit(),
        ),
        cost_estimate=cost,
    )(Qc, Kc, Vc, wq, bq, wk, bk, wv, bv, wo, bo)


def init_params(key, d_model):
    """Deterministic init mimicking PyTorch nn.Linear default (uniform +-1/sqrt(in))."""
    bound = 1.0 / math.sqrt(d_model)
    keys = jax.random.split(key, 8)

    def u(k, shape):
        return jax.random.uniform(k, shape, jnp.float32, -bound, bound)

    return {
        "wq": u(keys[0], (d_model, d_model)), "bq": u(keys[1], (1, d_model)),
        "wk": u(keys[2], (d_model, d_model)), "bk": u(keys[3], (1, d_model)),
        "wv": u(keys[4], (d_model, d_model)), "bv": u(keys[5], (1, d_model)),
        "wo": u(keys[6], (d_model, d_model)), "bo": u(keys[7], (1, d_model)),
    }


def mha_reference(Q, K, V, params, *, num_heads):
    """Pure-JAX reference mirroring the PyTorch forward."""
    B, S, D = Q.shape
    d_k = D // num_heads

    def proj(x, w, b):
        return x @ w + b

    def split(x):
        return x.reshape(B, S, num_heads, d_k).transpose(0, 2, 1, 3)

    q = split(proj(Q, params["wq"], params["bq"]))
    k = split(proj(K, params["wk"], params["bk"]))
    v = split(proj(V, params["wv"], params["bv"]))

    scores = jnp.einsum("bhqd,bhkd->bhqk", q, k) / math.sqrt(d_k)
    probs = jax.nn.softmax(scores, axis=-1)
    attn = jnp.einsum("bhqk,bhkd->bhqd", probs, v)
    attn = attn.transpose(0, 2, 1, 3).reshape(B, S, D)
    return attn @ params["wo"] + params["bo"]


if __name__ == "__main__":
    root = jax.random.PRNGKey(0)
    k1, k2 = jax.random.split(root)

    # --- Config 1: bf16 MXU operands (f32 accumulation), lane-dense D=128 ----
    B, S, D, H = 2, 8, 128, 4
    kq, kk, kv, kp = jax.random.split(k1, 4)
    Q = jax.random.normal(kq, (B, S, D), jnp.float32)
    K = jax.random.normal(kk, (B, S, D), jnp.float32)
    V = jax.random.normal(kv, (B, S, D), jnp.float32)
    params = init_params(kp, D)

    out = multi_head_attention(Q, K, V, params, num_heads=H,
                               compute_dtype=jnp.bfloat16)
    out = jax.block_until_ready(out)
    ref = mha_reference(Q, K, V, params, num_heads=H)
    assert out.shape == (B, S, D)
    assert jnp.allclose(out, ref, atol=3e-2, rtol=3e-2), "bf16 kernel mismatch vs reference"

    # --- Config 2: f32 operands, multi-tile query grid exercising the K/V cache
    B2, S2, D2, H2 = 2, 256, 128, 4
    kq2, kk2, kv2, kp2 = jax.random.split(k2, 4)
    Q2 = jax.random.normal(kq2, (B2, S2, D2), jnp.float32)
    K2 = jax.random.normal(kk2, (B2, S2, D2), jnp.float32)
    V2 = jax.random.normal(kv2, (B2, S2, D2), jnp.float32)
    params2 = init_params(kp2, D2)

    out2 = multi_head_attention(Q2, K2, V2, params2, num_heads=H2,
                                q_block=128, compute_dtype=jnp.float32)
    out2 = jax.block_until_ready(out2)
    ref2 = mha_reference(Q2, K2, V2, params2, num_heads=H2)
    assert out2.shape == (B2, S2, D2)
    assert jnp.allclose(out2, ref2, atol=5e-3, rtol=5e-3), "f32 kernel mismatch vs reference"

    print("KERNEL_OK")
</pallas_src>

<mosaic_0001>
module attributes {stable_mosaic.version = 11 : i64} {
  func.func @_mha_kernel(%arg0: i32, %arg1: i32, %arg2: i32, %arg3: memref<1x8x128xbf16, #tpu.memory_space<vmem>>, %arg4: memref<1x8x128xbf16, #tpu.memory_space<vmem>>, %arg5: memref<1x8x128xbf16, #tpu.memory_space<vmem>>, %arg6: memref<1x128x128xbf16, #tpu.memory_space<vmem>>, %arg7: memref<1x1x128xf32, #tpu.memory_space<vmem>>, %arg8: memref<1x128x128xbf16, #tpu.memory_space<vmem>>, %arg9: memref<1x1x128xf32, #tpu.memory_space<vmem>>, %arg10: memref<1x128x128xbf16, #tpu.memory_space<vmem>>, %arg11: memref<1x1x128xf32, #tpu.memory_space<vmem>>, %arg12: memref<1x128x128xbf16, #tpu.memory_space<vmem>>, %arg13: memref<1x128xf32, #tpu.memory_space<vmem>>, %arg14: memref<1x8x128xf32, #tpu.memory_space<vmem>>, %arg15: memref<8x128xf32, #tpu.memory_space<vmem>>, %arg16: memref<1x8x128xbf16, #tpu.memory_space<vmem>>, %arg17: memref<1x8x128xbf16, #tpu.memory_space<vmem>>) attributes {dimension_semantics = [#tpu.dimension_semantics<parallel>, #tpu.dimension_semantics<arbitrary>, #tpu.dimension_semantics<arbitrary>], iteration_bounds = array<i64: 2, 1, 1>, scalar_prefetch = 0 : i64, scratch_operands = 3 : i64, tpu.core_type = #tpu.core_type<tc>, window_params = [{transform_indices = @transform_0, window_bounds = array<i64: 1, 8, 128>}, {transform_indices = @transform_1, window_bounds = array<i64: 1, 8, 128>}, {transform_indices = @transform_2, window_bounds = array<i64: 1, 8, 128>}, {pipeline_mode = #tpu.pipeline_mode<synchronous>, transform_indices = @transform_3, window_bounds = array<i64: 1, 128, 128>}, {pipeline_mode = #tpu.pipeline_mode<synchronous>, transform_indices = @transform_4, window_bounds = array<i64: 1, 1, 128>}, {pipeline_mode = #tpu.pipeline_mode<synchronous>, transform_indices = @transform_5, window_bounds = array<i64: 1, 128, 128>}, {pipeline_mode = #tpu.pipeline_mode<synchronous>, transform_indices = @transform_6, window_bounds = array<i64: 1, 1, 128>}, {pipeline_mode = #tpu.pipeline_mode<synchronous>, transform_indices = @transform_7, window_bounds = array<i64: 1, 128, 128>}, {pipeline_mode = #tpu.pipeline_mode<synchronous>, transform_indices = @transform_8, window_bounds = array<i64: 1, 1, 128>}, {pipeline_mode = #tpu.pipeline_mode<synchronous>, transform_indices = @transform_9, window_bounds = array<i64: 1, 128, 128>}, {pipeline_mode = #tpu.pipeline_mode<synchronous>, transform_indices = @transform_10, window_bounds = array<i64: 1, 128>}, {transform_indices = @transform_11, window_bounds = array<i64: 1, 8, 128>}]} {
    %c0_i32 = arith.constant 0 : i32
    %0 = arith.cmpi eq, %arg2, %c0_i32 : i32
    %1 = arith.extui %0 : i1 to i32
    %c0_i32_0 = arith.constant 0 : i32
    %2 = arith.cmpi ne, %1, %c0_i32_0 : i32
    scf.if %2 {
      %cst_39 = arith.constant 0.000000e+00 : f32
      %102 = vector.broadcast %cst_39 : f32 to vector<8x128xf32>
      %c0_40 = arith.constant 0 : index
      %c0_41 = arith.constant 0 : index
      %103 = vector.load %arg15[%c0_40, %c0_41] : memref<8x128xf32, #tpu.memory_space<vmem>>, vector<8x128xf32>
      tpu.vector_store %arg15[%c0_40, %c0_41], %102 {strides = array<i32>} : memref<8x128xf32, #tpu.memory_space<vmem>>, vector<8x128xf32>,
    } else {
    }
    %c0 = arith.constant 0 : index
    %c0_1 = arith.constant 0 : index
    %c0_2 = arith.constant 0 : index
    %3 = vector.load %arg3[%c0, %c0_1, %c0_2] : memref<1x8x128xbf16, #tpu.memory_space<vmem>>, vector<1x8x128xbf16>
    %4 = vector.shape_cast %3 : vector<1x8x128xbf16> to vector<8x128xbf16>
    %c0_i32_3 = arith.constant 0 : i32
    %5 = arith.cmpi eq, %arg1, %c0_i32_3 : i32
    %6 = arith.extui %5 : i1 to i32
    %c0_i32_4 = arith.constant 0 : i32
    %7 = arith.cmpi ne, %6, %c0_i32_4 : i32
    scf.if %7 {
      %c0_39 = arith.constant 0 : index
      %c0_40 = arith.constant 0 : index
      %c0_41 = arith.constant 0 : index
      %102 = vector.load %arg4[%c0_39, %c0_40, %c0_41] : memref<1x8x128xbf16, #tpu.memory_space<vmem>>, vector<1x8x128xbf16>
      %103 = vector.shape_cast %102 : vector<1x8x128xbf16> to vector<8x128xbf16>
      %c0_42 = arith.constant 0 : index
      %c0_43 = arith.constant 0 : index
      %c0_44 = arith.constant 0 : index
      %104 = vector.load %arg5[%c0_42, %c0_43, %c0_44] : memref<1x8x128xbf16, #tpu.memory_space<vmem>>, vector<1x8x128xbf16>
      %105 = vector.shape_cast %104 : vector<1x8x128xbf16> to vector<8x128xbf16>
      %106 = arith.index_cast %arg2 : i32 to index
      %c0_45 = arith.constant 0 : index
      %c0_46 = arith.constant 0 : index
      %107 = vector.load %arg8[%106, %c0_45, %c0_46] : memref<1x128x128xbf16, #tpu.memory_space<vmem>>, vector<1x128x128xbf16>
      %108 = vector.shape_cast %107 : vector<1x128x128xbf16> to vector<128x128xbf16>
      %109 = arith.index_cast %arg2 : i32 to index
      %c0_47 = arith.constant 0 : index
      %c0_48 = arith.constant 0 : index
      %110 = vector.load %arg10[%109, %c0_47, %c0_48] : memref<1x128x128xbf16, #tpu.memory_space<vmem>>, vector<1x128x128xbf16>
      %111 = vector.shape_cast %110 : vector<1x128x128xbf16> to vector<128x128xbf16>
      %cst_49 = arith.constant dense<0.000000e+00> : vector<8x128xf32>
      %112 = tpu.matmul %103, %108, %cst_49 {dimension_numbers = #tpu.dot_dimension_numbers<[1], [0], [0], [1], [0, 0, 1, 1], [], []>} : vector<8x128xbf16>, vector<128x128xbf16>, vector<8x128xf32> -> vector<8x128xf32>
      %113 = arith.index_cast %arg2 : i32 to index
      %c0_50 = arith.constant 0 : index
      %c0_51 = arith.constant 0 : index
      %114 = vector.load %arg9[%113, %c0_50, %c0_51] : memref<1x1x128xf32, #tpu.memory_space<vmem>>, vector<1x1x128xf32>
      %115 = vector.shape_cast %114 : vector<1x1x128xf32> to vector<1x128xf32>
      %116 = vector.broadcast %115 : vector<1x128xf32> to vector<8x128xf32>
      %117 = arith.addf %112, %116 : vector<8x128xf32>
      %cst_52 = arith.constant dense<0.000000e+00> : vector<8x128xf32>
      %118 = tpu.matmul %105, %111, %cst_52 {dimension_numbers = #tpu.dot_dimension_numbers<[1], [0], [0], [1], [0, 0, 1, 1], [], []>} : vector<8x128xbf16>, vector<128x128xbf16>, vector<8x128xf32> -> vector<8x128xf32>
      %119 = arith.index_cast %arg2 : i32 to index
      %c0_53 = arith.constant 0 : index
      %c0_54 = arith.constant 0 : index
      %120 = vector.load %arg11[%119, %c0_53, %c0_54] : memref<1x1x128xf32, #tpu.memory_space<vmem>>, vector<1x1x128xf32>
      %121 = vector.shape_cast %120 : vector<1x1x128xf32> to vector<1x128xf32>
      %122 = vector.broadcast %121 : vector<1x128xf32> to vector<8x128xf32>
      %123 = arith.addf %118, %122 : vector<8x128xf32>
      %124 = arith.truncf %117 : vector<8x128xf32> to vector<8x128xbf16>
      %125 = arith.index_cast %arg2 : i32 to index
      %c0_55 = arith.constant 0 : index
      %c0_56 = arith.constant 0 : index
      %126 = vector.load %arg16[%125, %c0_55, %c0_56] : memref<1x8x128xbf16, #tpu.memory_space<vmem>>, vector<1x8x128xbf16>
      %127 = vector.shape_cast %126 : vector<1x8x128xbf16> to vector<8x128xbf16>
      %128 = vector.shape_cast %124 : vector<8x128xbf16> to vector<1x8x128xbf16>
      tpu.vector_store %arg16[%125, %c0_55, %c0_56], %128 {strides = array<i32>} : memref<1x8x128xbf16, #tpu.memory_space<vmem>>, vector<1x8x128xbf16>,
      %129 = arith.truncf %123 : vector<8x128xf32> to vector<8x128xbf16>
      %130 = arith.index_cast %arg2 : i32 to index
      %c0_57 = arith.constant 0 : index
      %c0_58 = arith.constant 0 : index
      %131 = vector.load %arg17[%130, %c0_57, %c0_58] : memref<1x8x128xbf16, #tpu.memory_space<vmem>>, vector<1x8x128xbf16>
      %132 = vector.shape_cast %131 : vector<1x8x128xbf16> to vector<8x128xbf16>
      %133 = vector.shape_cast %129 : vector<8x128xbf16> to vector<1x8x128xbf16>
      tpu.vector_store %arg17[%130, %c0_57, %c0_58], %133 {strides = array<i32>} : memref<1x8x128xbf16, #tpu.memory_space<vmem>>, vector<1x8x128xbf16>,
    } else {
    }
    %8 = arith.index_cast %arg2 : i32 to index
    %c0_5 = arith.constant 0 : index
    %c0_6 = arith.constant 0 : index
    %9 = vector.load %arg6[%8, %c0_5, %c0_6] : memref<1x128x128xbf16, #tpu.memory_space<vmem>>, vector<1x128x128xbf16>
    %10 = vector.shape_cast %9 : vector<1x128x128xbf16> to vector<128x128xbf16>
    %cst = arith.constant dense<0.000000e+00> : vector<8x128xf32>
    %11 = tpu.matmul %4, %10, %cst {dimension_numbers = #tpu.dot_dimension_numbers<[1], [0], [0], [1], [0, 0, 1, 1], [], []>} : vector<8x128xbf16>, vector<128x128xbf16>, vector<8x128xf32> -> vector<8x128xf32>
    %12 = arith.index_cast %arg2 : i32 to index
    %c0_7 = arith.constant 0 : index
    %c0_8 = arith.constant 0 : index
    %13 = vector.load %arg7[%12, %c0_7, %c0_8] : memref<1x1x128xf32, #tpu.memory_space<vmem>>, vector<1x1x128xf32>
    %14 = vector.shape_cast %13 : vector<1x1x128xf32> to vector<1x128xf32>
    %15 = vector.broadcast %14 : vector<1x128xf32> to vector<8x128xf32>
    %16 = arith.addf %11, %15 : vector<8x128xf32>
    %cst_9 = arith.constant 0.176776692 : f32
    %17 = vector.broadcast %cst_9 : f32 to vector<8x128xf32>
    %18 = arith.mulf %16, %17 : vector<8x128xf32>
    %19 = arith.truncf %18 : vector<8x128xf32> to vector<8x128xbf16>
    %20 = arith.index_cast %arg2 : i32 to index
    %c0_10 = arith.constant 0 : index
    %c0_11 = arith.constant 0 : index
    %21 = vector.load %arg16[%20, %c0_10, %c0_11] : memref<1x8x128xbf16, #tpu.memory_space<vmem>>, vector<1x8x128xbf16>
    %22 = vector.shape_cast %21 : vector<1x8x128xbf16> to vector<8x128xbf16>
    %23 = arith.index_cast %arg2 : i32 to index
    %c0_12 = arith.constant 0 : index
    %c0_13 = arith.constant 0 : index
    %24 = vector.load %arg17[%23, %c0_12, %c0_13] : memref<1x8x128xbf16, #tpu.memory_space<vmem>>, vector<1x8x128xbf16>
    %25 = vector.shape_cast %24 : vector<1x8x128xbf16> to vector<8x128xbf16>
    %26 = vector.extract_strided_slice %19 {offsets = [0, 0], sizes = [8, 32], strides = [1, 1]} : vector<8x128xbf16> to vector<8x32xbf16>
    %27 = vector.extract_strided_slice %22 {offsets = [0, 0], sizes = [8, 32], strides = [1, 1]} : vector<8x128xbf16> to vector<8x32xbf16>
    %28 = vector.extract_strided_slice %25 {offsets = [0, 0], sizes = [8, 32], strides = [1, 1]} : vector<8x128xbf16> to vector<8x32xbf16>
    %cst_14 = arith.constant dense<0.000000e+00> : vector<8x8xf32>
    %29 = tpu.matmul %26, %27, %cst_14 {dimension_numbers = #tpu.dot_dimension_numbers<[1], [1], [0], [0], [0, 0, 1, 0], [], []>} : vector<8x32xbf16>, vector<8x32xbf16>, vector<8x8xf32> -> vector<8x8xf32>
    %cst_15 = arith.constant dense<0xFF800000> : vector<8xf32>
    %30 = vector.multi_reduction <maximumf>, %29, %cst_15 [1] : vector<8x8xf32> to vector<8xf32>
    %31 = vector.shape_cast %30 : vector<8xf32> to vector<8x1xf32>
    %32 = vector.broadcast %31 : vector<8x1xf32> to vector<8x8xf32>
    %33 = arith.subf %29, %32 : vector<8x8xf32>
    %34 = math.exp %33 : vector<8x8xf32>
    %cst_16 = arith.constant dense<0.000000e+00> : vector<8xf32>
    %35 = vector.multi_reduction <add>, %34, %cst_16 [1] : vector<8x8xf32> to vector<8xf32>
    %36 = vector.shape_cast %35 : vector<8xf32> to vector<8x1xf32>
    %37 = tpu.reciprocal %36 {approx = true} : vector<8x1xf32> -> vector<8x1xf32>
    %38 = vector.broadcast %37 : vector<8x1xf32> to vector<8x8xf32>
    %39 = arith.mulf %34, %38 : vector<8x8xf32>
    %40 = arith.truncf %39 : vector<8x8xf32> to vector<8x8xbf16>
    %cst_17 = arith.constant dense<0.000000e+00> : vector<8x32xf32>
    %41 = tpu.matmul %40, %28, %cst_17 {dimension_numbers = #tpu.dot_dimension_numbers<[1], [0], [0], [1], [0, 0, 1, 1], [], []>} : vector<8x8xbf16>, vector<8x32xbf16>, vector<8x32xf32> -> vector<8x32xf32>
    %42 = vector.extract_strided_slice %19 {offsets = [0, 32], sizes = [8, 32], strides = [1, 1]} : vector<8x128xbf16> to vector<8x32xbf16>
    %43 = vector.extract_strided_slice %22 {offsets = [0, 32], sizes = [8, 32], strides = [1, 1]} : vector<8x128xbf16> to vector<8x32xbf16>
    %44 = vector.extract_strided_slice %25 {offsets = [0, 32], sizes = [8, 32], strides = [1, 1]} : vector<8x128xbf16> to vector<8x32xbf16>
    %cst_18 = arith.constant dense<0.000000e+00> : vector<8x8xf32>
    %45 = tpu.matmul %42, %43, %cst_18 {dimension_numbers = #tpu.dot_dimension_numbers<[1], [1], [0], [0], [0, 0, 1, 0], [], []>} : vector<8x32xbf16>, vector<8x32xbf16>, vector<8x8xf32> -> vector<8x8xf32>
    %cst_19 = arith.constant dense<0xFF800000> : vector<8xf32>
    %46 = vector.multi_reduction <maximumf>, %45, %cst_19 [1] : vector<8x8xf32> to vector<8xf32>
    %47 = vector.shape_cast %46 : vector<8xf32> to vector<8x1xf32>
    %48 = vector.broadcast %47 : vector<8x1xf32> to vector<8x8xf32>
    %49 = arith.subf %45, %48 : vector<8x8xf32>
    %50 = math.exp %49 : vector<8x8xf32>
    %cst_20 = arith.constant dense<0.000000e+00> : vector<8xf32>
    %51 = vector.multi_reduction <add>, %50, %cst_20 [1] : vector<8x8xf32> to vector<8xf32>
    %52 = vector.shape_cast %51 : vector<8xf32> to vector<8x1xf32>
    %53 = tpu.reciprocal %52 {approx = true} : vector<8x1xf32> -> vector<8x1xf32>
    %54 = vector.broadcast %53 : vector<8x1xf32> to vector<8x8xf32>
    %55 = arith.mulf %50, %54 : vector<8x8xf32>
    %56 = arith.truncf %55 : vector<8x8xf32> to vector<8x8xbf16>
    %cst_21 = arith.constant dense<0.000000e+00> : vector<8x32xf32>
    %57 = tpu.matmul %56, %44, %cst_21 {dimension_numbers = #tpu.dot_dimension_numbers<[1], [0], [0], [1], [0, 0, 1, 1], [], []>} : vector<8x8xbf16>, vector<8x32xbf16>, vector<8x32xf32> -> vector<8x32xf32>
    %58 = vector.extract_strided_slice %19 {offsets = [0, 64], sizes = [8, 32], strides = [1, 1]} : vector<8x128xbf16> to vector<8x32xbf16>
    %59 = vector.extract_strided_slice %22 {offsets = [0, 64], sizes = [8, 32], strides = [1, 1]} : vector<8x128xbf16> to vector<8x32xbf16>
    %60 = vector.extract_strided_slice %25 {offsets = [0, 64], sizes = [8, 32], strides = [1, 1]} : vector<8x128xbf16> to vector<8x32xbf16>
    %cst_22 = arith.constant dense<0.000000e+00> : vector<8x8xf32>
    %61 = tpu.matmul %58, %59, %cst_22 {dimension_numbers = #tpu.dot_dimension_numbers<[1], [1], [0], [0], [0, 0, 1, 0], [], []>} : vector<8x32xbf16>, vector<8x32xbf16>, vector<8x8xf32> -> vector<8x8xf32>
    %cst_23 = arith.constant dense<0xFF800000> : vector<8xf32>
    %62 = vector.multi_reduction <maximumf>, %61, %cst_23 [1] : vector<8x8xf32> to vector<8xf32>
    %63 = vector.shape_cast %62 : vector<8xf32> to vector<8x1xf32>
    %64 = vector.broadcast %63 : vector<8x1xf32> to vector<8x8xf32>
    %65 = arith.subf %61, %64 : vector<8x8xf32>
    %66 = math.exp %65 : vector<8x8xf32>
    %cst_24 = arith.constant dense<0.000000e+00> : vector<8xf32>
    %67 = vector.multi_reduction <add>, %66, %cst_24 [1] : vector<8x8xf32> to vector<8xf32>
    %68 = vector.shape_cast %67 : vector<8xf32> to vector<8x1xf32>
    %69 = tpu.reciprocal %68 {approx = true} : vector<8x1xf32> -> vector<8x1xf32>
    %70 = vector.broadcast %69 : vector<8x1xf32> to vector<8x8xf32>
    %71 = arith.mulf %66, %70 : vector<8x8xf32>
    %72 = arith.truncf %71 : vector<8x8xf32> to vector<8x8xbf16>
    %cst_25 = arith.constant dense<0.000000e+00> : vector<8x32xf32>
    %73 = tpu.matmul %72, %60, %cst_25 {dimension_numbers = #tpu.dot_dimension_numbers<[1], [0], [0], [1], [0, 0, 1, 1], [], []>} : vector<8x8xbf16>, vector<8x32xbf16>, vector<8x32xf32> -> vector<8x32xf32>
    %74 = vector.extract_strided_slice %19 {offsets = [0, 96], sizes = [8, 32], strides = [1, 1]} : vector<8x128xbf16> to vector<8x32xbf16>
    %75 = vector.extract_strided_slice %22 {offsets = [0, 96], sizes = [8, 32], strides = [1, 1]} : vector<8x128xbf16> to vector<8x32xbf16>
    %76 = vector.extract_strided_slice %25 {offsets = [0, 96], sizes = [8, 32], strides = [1, 1]} : vector<8x128xbf16> to vector<8x32xbf16>
    %cst_26 = arith.constant dense<0.000000e+00> : vector<8x8xf32>
    %77 = tpu.matmul %74, %75, %cst_26 {dimension_numbers = #tpu.dot_dimension_numbers<[1], [1], [0], [0], [0, 0, 1, 0], [], []>} : vector<8x32xbf16>, vector<8x32xbf16>, vector<8x8xf32> -> vector<8x8xf32>
    %cst_27 = arith.constant dense<0xFF800000> : vector<8xf32>
    %78 = vector.multi_reduction <maximumf>, %77, %cst_27 [1] : vector<8x8xf32> to vector<8xf32>
    %79 = vector.shape_cast %78 : vector<8xf32> to vector<8x1xf32>
    %80 = vector.broadcast %79 : vector<8x1xf32> to vector<8x8xf32>
    %81 = arith.subf %77, %80 : vector<8x8xf32>
    %82 = math.exp %81 : vector<8x8xf32>
    %cst_28 = arith.constant dense<0.000000e+00> : vector<8xf32>
    %83 = vector.multi_reduction <add>, %82, %cst_28 [1] : vector<8x8xf32> to vector<8xf32>
    %84 = vector.shape_cast %83 : vector<8xf32> to vector<8x1xf32>
    %85 = tpu.reciprocal %84 {approx = true} : vector<8x1xf32> -> vector<8x1xf32>
    %86 = vector.broadcast %85 : vector<8x1xf32> to vector<8x8xf32>
    %87 = arith.mulf %82, %86 : vector<8x8xf32>
    %88 = arith.truncf %87 : vector<8x8xf32> to vector<8x8xbf16>
    %cst_29 = arith.constant dense<0.000000e+00> : vector<8x32xf32>
    %89 = tpu.matmul %88, %76, %cst_29 {dimension_numbers = #tpu.dot_dimension_numbers<[1], [0], [0], [1], [0, 0, 1, 1], [], []>} : vector<8x8xbf16>, vector<8x32xbf16>, vector<8x32xf32> -> vector<8x32xf32>
    %90 = tpu.concatenate %41, %57, %73, %89 in 1 : vector<8x32xf32>, vector<8x32xf32>, vector<8x32xf32>, vector<8x32xf32> -> vector<8x128xf32>
    %91 = arith.index_cast %arg2 : i32 to index
    %c0_30 = arith.constant 0 : index
    %c0_31 = arith.constant 0 : index
    %92 = vector.load %arg12[%91, %c0_30, %c0_31] : memref<1x128x128xbf16, #tpu.memory_space<vmem>>, vector<1x128x128xbf16>
    %93 = vector.shape_cast %92 : vector<1x128x128xbf16> to vector<128x128xbf16>
    %c0_32 = arith.constant 0 : index
    %c0_33 = arith.constant 0 : index
    %94 = vector.load %arg15[%c0_32, %c0_33] : memref<8x128xf32, #tpu.memory_space<vmem>>, vector<8x128xf32>
    %95 = arith.truncf %90 : vector<8x128xf32> to vector<8x128xbf16>
    %cst_34 = arith.constant dense<0.000000e+00> : vector<8x128xf32>
    %96 = tpu.matmul %95, %93, %cst_34 {dimension_numbers = #tpu.dot_dimension_numbers<[1], [0], [0], [1], [0, 0, 1, 1], [], []>} : vector<8x128xbf16>, vector<128x128xbf16>, vector<8x128xf32> -> vector<8x128xf32>
    %97 = arith.addf %94, %96 : vector<8x128xf32>
    %c0_35 = arith.constant 0 : index
    %c0_36 = arith.constant 0 : index
    %98 = vector.load %arg15[%c0_35, %c0_36] : memref<8x128xf32, #tpu.memory_space<vmem>>, vector<8x128xf32>
    tpu.vector_store %arg15[%c0_35, %c0_36], %97 {strides = array<i32>} : memref<8x128xf32, #tpu.memory_space<vmem>>, vector<8x128xf32>,
    %c0_i32_37 = arith.constant 0 : i32
    %99 = arith.cmpi eq, %arg2, %c0_i32_37 : i32
    %100 = arith.extui %99 : i1 to i32
    %c0_i32_38 = arith.constant 0 : i32
    %101 = arith.cmpi ne, %100, %c0_i32_38 : i32
    scf.if %101 {
      %c0_39 = arith.constant 0 : index
      %c0_40 = arith.constant 0 : index
      %102 = vector.load %arg15[%c0_39, %c0_40] : memref<8x128xf32, #tpu.memory_space<vmem>>, vector<8x128xf32>
      %c0_41 = arith.constant 0 : index
      %c0_42 = arith.constant 0 : index
      %103 = vector.load %arg13[%c0_41, %c0_42] : memref<1x128xf32, #tpu.memory_space<vmem>>, vector<1x128xf32>
      %104 = vector.broadcast %103 : vector<1x128xf32> to vector<8x128xf32>
      %105 = arith.addf %102, %104 : vector<8x128xf32>
      %c0_43 = arith.constant 0 : index
      %c0_44 = arith.constant 0 : index
      %c0_45 = arith.constant 0 : index
      %106 = vector.load %arg14[%c0_43, %c0_44, %c0_45] : memref<1x8x128xf32, #tpu.memory_space<vmem>>, vector<1x8x128xf32>
      %107 = vector.shape_cast %106 : vector<1x8x128xf32> to vector<8x128xf32>
      %108 = vector.shape_cast %105 : vector<8x128xf32> to vector<1x8x128xf32>
      tpu.vector_store %arg14[%c0_43, %c0_44, %c0_45], %108 {strides = array<i32>} : memref<1x8x128xf32, #tpu.memory_space<vmem>>, vector<1x8x128xf32>,
    } else {
    }
    return
  }
  func.func @transform_0(%arg0: i32, %arg1: i32, %arg2: i32) -> (i32, i32, i32) {
    %c0_i32 = arith.constant 0 : i32
    %c0_i32_0 = arith.constant 0 : i32
    return %arg0, %arg1, %c0_i32 : i32, i32, i32
  }
  func.func @transform_1(%arg0: i32, %arg1: i32, %arg2: i32) -> (i32, i32, i32) {
    %c0_i32 = arith.constant 0 : i32
    %c0_i32_0 = arith.constant 0 : i32
    %c0_i32_1 = arith.constant 0 : i32
    return %arg0, %c0_i32, %c0_i32_0 : i32, i32, i32
  }
  func.func @transform_2(%arg0: i32, %arg1: i32, %arg2: i32) -> (i32, i32, i32) {
    %c0_i32 = arith.constant 0 : i32
    %c0_i32_0 = arith.constant 0 : i32
    %c0_i32_1 = arith.constant 0 : i32
    return %arg0, %c0_i32, %c0_i32_0 : i32, i32, i32
  }
  func.func @transform_3(%arg0: i32, %arg1: i32, %arg2: i32) -> (i32, i32, i32) {
    %c0_i32 = arith.constant 0 : i32
    %c0_i32_0 = arith.constant 0 : i32
    %c0_i32_1 = arith.constant 0 : i32
    %c0_i32_2 = arith.constant 0 : i32
    return %c0_i32, %c0_i32_0, %c0_i32_1 : i32, i32, i32
  }
  func.func @transform_4(%arg0: i32, %arg1: i32, %arg2: i32) -> (i32, i32, i32) {
    %c0_i32 = arith.constant 0 : i32
    %c0_i32_0 = arith.constant 0 : i32
    %c0_i32_1 = arith.constant 0 : i32
    %c0_i32_2 = arith.constant 0 : i32
    return %c0_i32, %c0_i32_0, %c0_i32_1 : i32, i32, i32
  }
  func.func @transform_5(%arg0: i32, %arg1: i32, %arg2: i32) -> (i32, i32, i32) {
    %c0_i32 = arith.constant 0 : i32
    %c0_i32_0 = arith.constant 0 : i32
    %c0_i32_1 = arith.constant 0 : i32
    %c0_i32_2 = arith.constant 0 : i32
    return %c0_i32, %c0_i32_0, %c0_i32_1 : i32, i32, i32
  }
  func.func @transform_6(%arg0: i32, %arg1: i32, %arg2: i32) -> (i32, i32, i32) {
    %c0_i32 = arith.constant 0 : i32
    %c0_i32_0 = arith.constant 0 : i32
    %c0_i32_1 = arith.constant 0 : i32
    %c0_i32_2 = arith.constant 0 : i32
    return %c0_i32, %c0_i32_0, %c0_i32_1 : i32, i32, i32
  }
  func.func @transform_7(%arg0: i32, %arg1: i32, %arg2: i32) -> (i32, i32, i32) {
    %c0_i32 = arith.constant 0 : i32
    %c0_i32_0 = arith.constant 0 : i32
    %c0_i32_1 = arith.constant 0 : i32
    %c0_i32_2 = arith.constant 0 : i32
    return %c0_i32, %c0_i32_0, %c0_i32_1 : i32, i32, i32
  }
  func.func @transform_8(%arg0: i32, %arg1: i32, %arg2: i32) -> (i32, i32, i32) {
    %c0_i32 = arith.constant 0 : i32
    %c0_i32_0 = arith.constant 0 : i32
    %c0_i32_1 = arith.constant 0 : i32
    %c0_i32_2 = arith.constant 0 : i32
    return %c0_i32, %c0_i32_0, %c0_i32_1 : i32, i32, i32
  }
  func.func @transform_9(%arg0: i32, %arg1: i32, %arg2: i32) -> (i32, i32, i32) {
    %c0_i32 = arith.constant 0 : i32
    %c0_i32_0 = arith.constant 0 : i32
    %c0_i32_1 = arith.constant 0 : i32
    %c0_i32_2 = arith.constant 0 : i32
    return %c0_i32, %c0_i32_0, %c0_i32_1 : i32, i32, i32
  }
  func.func @transform_10(%arg0: i32, %arg1: i32, %arg2: i32) -> (i32, i32) {
    %c0_i32 = arith.constant 0 : i32
    %c0_i32_0 = arith.constant 0 : i32
    %c0_i32_1 = arith.constant 0 : i32
    return %c0_i32, %c0_i32_0 : i32, i32
  }
  func.func @transform_11(%arg0: i32, %arg1: i32, %arg2: i32) -> (i32, i32, i32) {
    %c0_i32 = arith.constant 0 : i32
    %c0_i32_0 = arith.constant 0 : i32
    return %arg0, %arg1, %c0_i32 : i32, i32, i32
  }
}

</mosaic_0001>

<llo_original>
// kernel: tpu_custom_call.1
$region0: #{tpu_custom_call.1}
  #allocation0 [shape = 'u32[]', space=smem, size = 0x4, offset = 0x4, fixed_abs, tag = 'smem constant byte address 0x4 - core index']
  #allocation1 [shape = 'u32[144,128]{1,0:T(1,128)}', space=vmem, size = 0x12000, scoped, tag = 'internal scratch']
  #allocation2 [shape = 'f32[8,128]{1,0:T(8,128)}', space=vmem, size = 0x1000, scoped, tag = 'scratch operand']
  #allocation3 [shape = 'bf16[1,8,128]{2,1,0:T(8,128)(2,1)}', space=vmem, size = 0x800, scoped, tag = 'scratch operand']
  #allocation4 [shape = 'bf16[1,8,128]{2,1,0:T(8,128)(2,1)}', space=vmem, size = 0x800, scoped, tag = 'scratch operand']
  %s0 = inlined_call_operand.hbm [shape: bf16[2,8,128], index: 0, kind: input, shape index: {}]
  %s1 = inlined_call_operand.hbm [shape: bf16[2,8,128], index: 1, kind: input, shape index: {}]
  %s2 = inlined_call_operand.hbm [shape: bf16[2,8,128], index: 2, kind: input, shape index: {}]
  %s3 = inlined_call_operand.hbm [shape: bf16[1,128,128], index: 3, kind: input, shape index: {}]
  %s4 = inlined_call_operand.vmem [shape: f32[1,1,128], index: 4, kind: input, shape index: {}]
  %s5 = inlined_call_operand.hbm [shape: bf16[1,128,128], index: 5, kind: input, shape index: {}]
  %s6 = inlined_call_operand.vmem [shape: f32[1,1,128], index: 6, kind: input, shape index: {}]
  %s7 = inlined_call_operand.hbm [shape: bf16[1,128,128], index: 7, kind: input, shape index: {}]
  %s8 = inlined_call_operand.vmem [shape: f32[1,1,128], index: 8, kind: input, shape index: {}]
  %s9 = inlined_call_operand.hbm [shape: bf16[1,128,128], index: 9, kind: input, shape index: {}]
  %s10 = inlined_call_operand.vmem [shape: f32[1,128], index: 10, kind: input, shape index: {}]
  %s11 = inlined_call_operand.hbm [shape: f32[2,8,128], index: 11, kind: output, shape index: {}]
  %s12 = sld [smem:[#allocation0]]
  $region117: #{tpu_custom_call.1} parent=0
    _
  %s14 = ssub.s32 1, %s12
  %s15 = scalar_select 0, %s14, %s12
  $region1: #{tpu_custom_call.1} parent=0
    #allocation5 [shape = 'u8[4096]{0}', space=vmem, size = 0x1000, scoped, tag = 'input window, operand 0']
    #allocation6 [shape = 's32[2]{0}', space=sflag, size = 0x8, scoped, tag = 'scoped memory for tpu_custom_call.1']
    #allocation7 [shape = 's32[2]{0}', space=sflag, size = 0x8, scoped, tag = 'scoped memory for tpu_custom_call.1']
    #allocation8 [shape = 'u8[4096]{0}', space=vmem, size = 0x1000, scoped, tag = 'input window, operand 1']
    #allocation9 [shape = 's32[2]{0}', space=sflag, size = 0x8, scoped, tag = 'scoped memory for tpu_custom_call.1']
    #allocation10 [shape = 'u8[4096]{0}', space=vmem, size = 0x1000, scoped, tag = 'input window, operand 2']
    #allocation11 [shape = 'u8[32768]{0}', space=vmem, size = 0x8000, scoped, tag = 'input window, operand 3, single buffered']
    #allocation12 [shape = 's32[1]{0}', space=sflag, size = 0x4, scoped, tag = 'scoped memory for tpu_custom_call.1']
    #allocation13 [shape = 'u8[32768]{0}', space=vmem, size = 0x8000, scoped, tag = 'input window, operand 5, single buffered']
    #allocation14 [shape = 'u8[32768]{0}', space=vmem, size = 0x8000, scoped, tag = 'input window, operand 7, single buffered']
    #allocation15 [shape = 's32[1]{0}', space=sflag, size = 0x4, scoped, tag = 'scoped memory for tpu_custom_call.1']
    #allocation16 [shape = 'u8[32768]{0}', space=vmem, size = 0x8000, scoped, tag = 'input window, operand 9, single buffered']
    #allocation17 [shape = 'u8[8192]{0}', space=vmem, size = 0x2000, scoped, tag = 'output window, operand 0']
    %16 = vsyncpa [#allocation6], 0
    %s17 = scalar_lea.sflag [#allocation6], 1
    %18 = vsyncpa %s17, 0
    %19 = vsyncpa [#allocation9], 0
    %s20 = scalar_lea.sflag [#allocation9], 1
    %21 = vsyncpa %s20, 0
    %22 = vsyncpa [#allocation12], 0
    %23 = vsyncpa [#allocation15], 0
    %24 = vsyncpa [#allocation7], 0
    %s25 = scalar_lea.sflag [#allocation7], 1
    %26 = vsyncpa %s25, 0
    loop: start=0, step=1, limit=4
    $region2: #{tpu_custom_call.1} parent=1 // loop_pre_header
      _
    $region3: #{tpu_custom_call.1} parent=1 // loop_header
      %s28 = sphi 0, %s32
      %p29 = scmp.ge.s32.totalorder %s28, 4
      %s35 = sphi 0, %s54
      %s36 = sphi 0, %s50
      %s37 = sphi 0, %s46
      %s38 = sphi 0, %s35
      %s39 = sphi 0, %s36
      %s40 = sphi 0, %s37
      %s41 = sphi 0, %s38
      %s42 = sphi 0, %s39
      %s43 = sphi 0, %s40
      %s59 = sphi 0, %s61
      %s62 = sphi 0, %s59
      %s63 = sphi 0, %s62
      %s79 = sphi 0, %s63
      %s85 = sphi 0, %s87
      %s88 = sphi 0, %s85
      %s89 = sphi 0, %s88
      %s105 = sphi 0, %s89
      %s111 = sphi 0, %s113
      %s114 = sphi 0, %s111
      %s115 = sphi 0, %s114
      %s131 = sphi 0, %s115
      %s135 = sphi 0, %s135
      %s137 = sphi 0, %s135
      %s138 = sphi 0, %s137
      %s152 = sphi 0, %s138
      %s156 = sphi 0, %s156
      %s158 = sphi 0, %s156
      %s159 = sphi 0, %s158
      %s173 = sphi 0, %s159
      %s177 = sphi 0, %s177
      %s179 = sphi 0, %s177
      %s180 = sphi 0, %s179
      %s194 = sphi 0, %s180
      %s198 = sphi 0, %s198
      %s200 = sphi 0, %s198
      %s201 = sphi 0, %s200
      %s215 = sphi 0, %s201
      %s219 = sphi 0, %s219
      %s221 = sphi 0, %s219
      %s222 = sphi 0, %s221
      %s236 = sphi 0, %s222
      %s240 = sphi 0, %s240
      %s242 = sphi 0, %s240
      %s243 = sphi 0, %s242
      %s257 = sphi 0, %s243
      %s261 = sphi 0, %s261
      %s263 = sphi 0, %s261
      %s264 = sphi 0, %s263
      %s278 = sphi 0, %s264
      %s282 = sphi 0, %s282
      %s284 = sphi 0, %s282
      %s285 = sphi 0, %s284
      %s299 = sphi 0, %s285
      %s307 = sphi 0, %s309
      %s310 = sphi 0, %s307
      %s311 = sphi 0, %s310
      %s327 = sphi 0, %s311
    $region4: #{tpu_custom_call.1} parent=1 // loop_header_branch
      %31 = sbr.rel (%p29) target = $region8
    $region5: #{tpu_custom_call.1} parent=1 // loop_body
      %s33 = ssub.s32 %s28, 1
      %s34 = ssub.s32 %s28, 2
      %s44 = sadd.s32 1, %s37
      %p45 = scmp.ge.s32.totalorder %s44, 1
      %s46 = scalar_select %p45, 0, %s44
      %s47 = sadd.s32 1, %s36
      %s48 = scalar_select %p45, %s47, %s36
      %p49 = scmp.ge.s32.totalorder %s48, 1
      %s50 = scalar_select %p49, 0, %s48
      %s51 = sadd.s32 1, %s35
      %s52 = scalar_select %p49, %s51, %s35
      %p53 = scmp.ge.s32.totalorder %s52, 2
      %s54 = scalar_select %p53, 0, %s52
      %s55 = ssub.s32 %s35, %s54
      %s56 = ssub.s32 %s36, %s50
      %s57 = sor.u32 %s55, %s56
      %p58 = scmp.eq.s32.totalorder %s57, 0
      %s60 = sadd.s32 %s59, 1
      %s61 = scalar_select %p58, %s59, %s60
      %p64 = pneg %p58
      %p65 = scmp.eq.s32.totalorder %s28, 1
      %p66 = por %p64, %p65
      %p67 = scmp.ne.s32.totalorder %s59, %s62
      %p68 = scmp.eq.s32.totalorder %s28, 0
      %p69 = por %p67, %p68
      %p70 = scmp.ne.s32.totalorder %s59, %s62
      %p71 = scmp.eq.s32.totalorder %s33, 1
      %p72 = por %p70, %p71
      %p73 = scmp.ne.s32.totalorder %s62, %s63
      %p74 = scmp.eq.s32.totalorder %s33, 0
      %p75 = por %p73, %p74
      %p76 = scmp.ne.s32.totalorder %s62, %s63
      %p77 = scmp.eq.s32.totalorder %s34, 1
      %p78 = por %p76, %p77
      %p80 = scmp.ne.s32.totalorder %s63, %s79
      %p81 = scmp.eq.s32.totalorder %s34, 0
      %p82 = por %p80, %p81
      %s83 = ssub.s32 %s35, %s54
      %p84 = scmp.eq.s32.totalorder %s83, 0
      %s86 = sadd.s32 %s85, 1
      %s87 = scalar_select %p84, %s85, %s86
      %p90 = pneg %p84
      %p91 = scmp.eq.s32.totalorder %s28, 1
      %p92 = por %p90, %p91
      %p93 = scmp.ne.s32.totalorder %s85, %s88
      %p94 = scmp.eq.s32.totalorder %s28, 0
      %p95 = por %p93, %p94
      %p96 = scmp.ne.s32.totalorder %s85, %s88
      %p97 = scmp.eq.s32.totalorder %s33, 1
      %p98 = por %p96, %p97
      %p99 = scmp.ne.s32.totalorder %s88, %s89
      %p100 = scmp.eq.s32.totalorder %s33, 0
      %p101 = por %p99, %p100
      %p102 = scmp.ne.s32.totalorder %s88, %s89
      %p103 = scmp.eq.s32.totalorder %s34, 1
      %p104 = por %p102, %p103
      %p106 = scmp.ne.s32.totalorder %s89, %s105
      %p107 = scmp.eq.s32.totalorder %s34, 0
      %p108 = por %p106, %p107
      %s109 = ssub.s32 %s35, %s54
      %p110 = scmp.eq.s32.totalorder %s109, 0
      %s112 = sadd.s32 %s111, 1
      %s113 = scalar_select %p110, %s111, %s112
      %p116 = pneg %p110
      %p117 = scmp.eq.s32.totalorder %s28, 1
      %p118 = por %p116, %p117
      %p119 = scmp.ne.s32.totalorder %s111, %s114
      %p120 = scmp.eq.s32.totalorder %s28, 0
      %p121 = por %p119, %p120
      %p122 = scmp.ne.s32.totalorder %s111, %s114
      %p123 = scmp.eq.s32.totalorder %s33, 1
      %p124 = por %p122, %p123
      %p125 = scmp.ne.s32.totalorder %s114, %s115
      %p126 = scmp.eq.s32.totalorder %s33, 0
      %p127 = por %p125, %p126
      %p128 = scmp.ne.s32.totalorder %s114, %s115
      %p129 = scmp.eq.s32.totalorder %s34, 1
      %p130 = por %p128, %p129
      %p132 = scmp.ne.s32.totalorder %s115, %s131
      %p133 = scmp.eq.s32.totalorder %s34, 0
      %p134 = por %p132, %p133
      %s136 = sadd.s32 %s135, 1
      %p139 = scmp.eq.s32.totalorder %s28, 1
      %p140 = scmp.ne.s32.totalorder %s135, %s137
      %p141 = scmp.eq.s32.totalorder %s28, 0
      %p142 = por %p140, %p141
      %p143 = scmp.ne.s32.totalorder %s135, %s137
      %p144 = scmp.eq.s32.totalorder %s33, 1
      %p145 = por %p143, %p144
      %p146 = scmp.ne.s32.totalorder %s137, %s138
      %p147 = scmp.eq.s32.totalorder %s33, 0
      %p148 = por %p146, %p147
      %p149 = scmp.ne.s32.totalorder %s137, %s138
      %p150 = scmp.eq.s32.totalorder %s34, 1
      %p151 = por %p149, %p150
      %p153 = scmp.ne.s32.totalorder %s138, %s152
      %p154 = scmp.eq.s32.totalorder %s34, 0
      %p155 = por %p153, %p154
      %s157 = sadd.s32 %s156, 1
      %p160 = scmp.eq.s32.totalorder %s28, 1
      %p161 = scmp.ne.s32.totalorder %s156, %s158
      %p162 = scmp.eq.s32.totalorder %s28, 0
      %p163 = por %p161, %p162
      %p164 = scmp.ne.s32.totalorder %s156, %s158
      %p165 = scmp.eq.s32.totalorder %s33, 1
      %p166 = por %p164, %p165
      %p167 = scmp.ne.s32.totalorder %s158, %s159
      %p168 = scmp.eq.s32.totalorder %s33, 0
      %p169 = por %p167, %p168
      %p170 = scmp.ne.s32.totalorder %s158, %s159
      %p171 = scmp.eq.s32.totalorder %s34, 1
      %p172 = por %p170, %p171
      %p174 = scmp.ne.s32.totalorder %s159, %s173
      %p175 = scmp.eq.s32.totalorder %s34, 0
      %p176 = por %p174, %p175
      %s178 = sadd.s32 %s177, 1
      %p181 = scmp.eq.s32.totalorder %s28, 1
      %p182 = scmp.ne.s32.totalorder %s177, %s179
      %p183 = scmp.eq.s32.totalorder %s28, 0
      %p184 = por %p182, %p183
      %p185 = scmp.ne.s32.totalorder %s177, %s179
      %p186 = scmp.eq.s32.totalorder %s33, 1
      %p187 = por %p185, %p186
      %p188 = scmp.ne.s32.totalorder %s179, %s180
      %p189 = scmp.eq.s32.totalorder %s33, 0
      %p190 = por %p188, %p189
      %p191 = scmp.ne.s32.totalorder %s179, %s180
      %p192 = scmp.eq.s32.totalorder %s34, 1
      %p193 = por %p191, %p192
      %p195 = scmp.ne.s32.totalorder %s180, %s194
      %p196 = scmp.eq.s32.totalorder %s34, 0
      %p197 = por %p195, %p196
      %s199 = sadd.s32 %s198, 1
      %p202 = scmp.eq.s32.totalorder %s28, 1
      %p203 = scmp.ne.s32.totalorder %s198, %s200
      %p204 = scmp.eq.s32.totalorder %s28, 0
      %p205 = por %p203, %p204
      %p206 = scmp.ne.s32.totalorder %s198, %s200
      %p207 = scmp.eq.s32.totalorder %s33, 1
      %p208 = por %p206, %p207
      %p209 = scmp.ne.s32.totalorder %s200, %s201
      %p210 = scmp.eq.s32.totalorder %s33, 0
      %p211 = por %p209, %p210
      %p212 = scmp.ne.s32.totalorder %s200, %s201
      %p213 = scmp.eq.s32.totalorder %s34, 1
      %p214 = por %p212, %p213
      %p216 = scmp.ne.s32.totalorder %s201, %s215
      %p217 = scmp.eq.s32.totalorder %s34, 0
      %p218 = por %p216, %p217
      %s220 = sadd.s32 %s219, 1
      %p223 = scmp.eq.s32.totalorder %s28, 1
      %p224 = scmp.ne.s32.totalorder %s219, %s221
      %p225 = scmp.eq.s32.totalorder %s28, 0
      %p226 = por %p224, %p225
      %p227 = scmp.ne.s32.totalorder %s219, %s221
      %p228 = scmp.eq.s32.totalorder %s33, 1
      %p229 = por %p227, %p228
      %p230 = scmp.ne.s32.totalorder %s221, %s222
      %p231 = scmp.eq.s32.totalorder %s33, 0
      %p232 = por %p230, %p231
      %p233 = scmp.ne.s32.totalorder %s221, %s222
      %p234 = scmp.eq.s32.totalorder %s34, 1
      %p235 = por %p233, %p234
      %p237 = scmp.ne.s32.totalorder %s222, %s236
      %p238 = scmp.eq.s32.totalorder %s34, 0
      %p239 = por %p237, %p238
      %s241 = sadd.s32 %s240, 1
      %p244 = scmp.eq.s32.totalorder %s28, 1
      %p245 = scmp.ne.s32.totalorder %s240, %s242
      %p246 = scmp.eq.s32.totalorder %s28, 0
      %p247 = por %p245, %p246
      %p248 = scmp.ne.s32.totalorder %s240, %s242
      %p249 = scmp.eq.s32.totalorder %s33, 1
      %p250 = por %p248, %p249
      %p251 = scmp.ne.s32.totalorder %s242, %s243
      %p252 = scmp.eq.s32.totalorder %s33, 0
      %p253 = por %p251, %p252
      %p254 = scmp.ne.s32.totalorder %s242, %s243
      %p255 = scmp.eq.s32.totalorder %s34, 1
      %p256 = por %p254, %p255
      %p258 = scmp.ne.s32.totalorder %s243, %s257
      %p259 = scmp.eq.s32.totalorder %s34, 0
      %p260 = por %p258, %p259
      %s262 = sadd.s32 %s261, 1
      %p265 = scmp.eq.s32.totalorder %s28, 1
      %p266 = scmp.ne.s32.totalorder %s261, %s263
      %p267 = scmp.eq.s32.totalorder %s28, 0
      %p268 = por %p266, %p267
      %p269 = scmp.ne.s32.totalorder %s261, %s263
      %p270 = scmp.eq.s32.totalorder %s33, 1
      %p271 = por %p269, %p270
      %p272 = scmp.ne.s32.totalorder %s263, %s264
      %p273 = scmp.eq.s32.totalorder %s33, 0
      %p274 = por %p272, %p273
      %p275 = scmp.ne.s32.totalorder %s263, %s264
      %p276 = scmp.eq.s32.totalorder %s34, 1
      %p277 = por %p275, %p276
      %p279 = scmp.ne.s32.totalorder %s264, %s278
      %p280 = scmp.eq.s32.totalorder %s34, 0
      %p281 = por %p279, %p280
      %s283 = sadd.s32 %s282, 1
      %p286 = scmp.eq.s32.totalorder %s28, 1
      %p287 = scmp.ne.s32.totalorder %s282, %s284
      %p288 = scmp.eq.s32.totalorder %s28, 0
      %p289 = por %p287, %p288
      %p290 = scmp.ne.s32.totalorder %s282, %s284
      %p291 = scmp.eq.s32.totalorder %s33, 1
      %p292 = por %p290, %p291
      %p293 = scmp.ne.s32.totalorder %s284, %s285
      %p294 = scmp.eq.s32.totalorder %s33, 0
      %p295 = por %p293, %p294
      %p296 = scmp.ne.s32.totalorder %s284, %s285
      %p297 = scmp.eq.s32.totalorder %s34, 1
      %p298 = por %p296, %p297
      %p300 = scmp.ne.s32.totalorder %s285, %s299
      %p301 = scmp.eq.s32.totalorder %s34, 0
      %p302 = por %p300, %p301
      %s303 = ssub.s32 %s35, %s54
      %s304 = ssub.s32 %s36, %s50
      %s305 = sor.u32 %s303, %s304
      %p306 = scmp.eq.s32.totalorder %s305, 0
      %s308 = sadd.s32 %s307, 1
      %s309 = scalar_select %p306, %s307, %s308
      %p312 = pneg %p306
      %p313 = scmp.eq.s32.totalorder %s28, 1
      %p314 = por %p312, %p313
      %p315 = scmp.ne.s32.totalorder %s307, %s310
      %p316 = scmp.eq.s32.totalorder %s28, 0
      %p317 = por %p315, %p316
      %p318 = scmp.ne.s32.totalorder %s307, %s310
      %p319 = scmp.eq.s32.totalorder %s33, 1
      %p320 = por %p318, %p319
      %p321 = scmp.ne.s32.totalorder %s310, %s311
      %p322 = scmp.eq.s32.totalorder %s33, 0
      %p323 = por %p321, %p322
      %p324 = scmp.ne.s32.totalorder %s310, %s311
      %p325 = scmp.eq.s32.totalorder %s34, 1
      %p326 = por %p324, %p325
      %p328 = scmp.ne.s32.totalorder %s311, %s327
      %p329 = scmp.eq.s32.totalorder %s34, 0
      %p330 = por %p328, %p329
      %p331 = scmp.le.s32.totalorder 1, %s28
      %p332 = scmp.lt.s32.totalorder %s28, 3
      %p333 = pnand %p331, %p332
      %p334 = pneg %p333
      // Predicated region
      $region9: #{tpu_custom_call.1} parent=5 // pred_check
        _
      $region10: #{tpu_custom_call.1} parent=5 // pred_check_branch
        %336 = sbr.rel (%p333) target = $region12
      $region11: #{tpu_custom_call.1} parent=5 // pred_region
        %s337 = ssub.s32 %s28, 1
        // Predicated region
        $region13: #{tpu_custom_call.1} parent=11 // pred_check
          %p338 = pneg %p148
        $region14: #{tpu_custom_call.1} parent=11 // pred_check_branch
          %340 = sbr.rel (%p338) target = $region16
        $region15: #{tpu_custom_call.1} parent=11 // pred_region
          %s342 = ssub.s32 1024, 1024
          %343 = vsyncadd [#allocation12], %s342
          %s344 = sshll.u32 [#allocation11], 4
          %s345 = int_to_ptr.vmem [resolvable:$true] %s344
          %350 = dma.hbm_to_vmem [thread:$0]  %s3, 1024, %s345, [#allocation12], 64, 64, 4
        $region16: #{tpu_custom_call.1} parent=11 // pred_fallthru
          _
        // Predicated region
        $region17: #{tpu_custom_call.1} parent=11 // pred_check
          %p351 = pneg %p169
        $region18: #{tpu_custom_call.1} parent=11 // pred_check_branch
          %353 = sbr.rel (%p351) target = $region20
        $region19: #{tpu_custom_call.1} parent=11 // pred_region
          _
        $region20: #{tpu_custom_call.1} parent=11 // pred_fallthru
          _
        // Predicated region
        $region21: #{tpu_custom_call.1} parent=11 // pred_check
          %p354 = pneg %p190
        $region22: #{tpu_custom_call.1} parent=11 // pred_check_branch
          %356 = sbr.rel (%p354) target = $region24
        $region23: #{tpu_custom_call.1} parent=11 // pred_region
          %s358 = ssub.s32 1024, 1024
          %359 = vsyncadd [#allocation12], %s358
          %s360 = sshll.u32 [#allocation13], 4
          %s361 = int_to_ptr.vmem [resolvable:$true] %s360
          %366 = dma.hbm_to_vmem [thread:$0]  %s5, 1024, %s361, [#allocation12], 64, 64, 4
        $region24: #{tpu_custom_call.1} parent=11 // pred_fallthru
          _
        // Predicated region
        $region25: #{tpu_custom_call.1} parent=11 // pred_check
          %p367 = pneg %p211
        $region26: #{tpu_custom_call.1} parent=11 // pred_check_branch
          %369 = sbr.rel (%p367) target = $region28
        $region27: #{tpu_custom_call.1} parent=11 // pred_region
          _
        $region28: #{tpu_custom_call.1} parent=11 // pred_fallthru
          _
        // Predicated region
        $region29: #{tpu_custom_call.1} parent=11 // pred_check
          %p370 = pneg %p232
        $region30: #{tpu_custom_call.1} parent=11 // pred_check_branch
          %372 = sbr.rel (%p370) target = $region32
        $region31: #{tpu_custom_call.1} parent=11 // pred_region
          %s374 = ssub.s32 1024, 1024
          %375 = vsyncadd [#allocation15], %s374
          %s376 = sshll.u32 [#allocation14], 4
          %s377 = int_to_ptr.vmem [resolvable:$true] %s376
          %382 = dma.hbm_to_vmem [thread:$0]  %s7, 1024, %s377, [#allocation15], 64, 64, 4
        $region32: #{tpu_custom_call.1} parent=11 // pred_fallthru
          _
        // Predicated region
        $region33: #{tpu_custom_call.1} parent=11 // pred_check
          %p383 = pneg %p253
        $region34: #{tpu_custom_call.1} parent=11 // pred_check_branch
          %385 = sbr.rel (%p383) target = $region36
        $region35: #{tpu_custom_call.1} parent=11 // pred_region
          _
        $region36: #{tpu_custom_call.1} parent=11 // pred_fallthru
          _
        // Predicated region
        $region37: #{tpu_custom_call.1} parent=11 // pred_check
          %p386 = pneg %p274
        $region38: #{tpu_custom_call.1} parent=11 // pred_check_branch
          %388 = sbr.rel (%p386) target = $region40
        $region39: #{tpu_custom_call.1} parent=11 // pred_region
          %s390 = ssub.s32 1024, 1024
          %391 = vsyncadd [#allocation15], %s390
          %s392 = sshll.u32 [#allocation16], 4
          %s393 = int_to_ptr.vmem [resolvable:$true] %s392
          %398 = dma.hbm_to_vmem [thread:$0]  %s9, 1024, %s393, [#allocation15], 64, 64, 4
        $region40: #{tpu_custom_call.1} parent=11 // pred_fallthru
          _
        // Predicated region
        $region41: #{tpu_custom_call.1} parent=11 // pred_check
          %p399 = pneg %p295
        $region42: #{tpu_custom_call.1} parent=11 // pred_check_branch
          %401 = sbr.rel (%p399) target = $region44
        $region43: #{tpu_custom_call.1} parent=11 // pred_region
          _
        $region44: #{tpu_custom_call.1} parent=11 // pred_fallthru
          _
      $region12: #{tpu_custom_call.1} parent=5 // pred_fallthru
        _
      %p402 = scmp.lt.s32.totalorder %s28, 2
      // Predicated region
      $region45: #{tpu_custom_call.1} parent=5 // pred_check
        %p403 = pneg %p402
      $region46: #{tpu_custom_call.1} parent=5 // pred_check_branch
        %405 = sbr.rel (%p403) target = $region48
      $region47: #{tpu_custom_call.1} parent=5 // pred_region
        // Predicated region
        $region49: #{tpu_custom_call.1} parent=47 // pred_check
          %p406 = pneg %p69
        $region50: #{tpu_custom_call.1} parent=47 // pred_check_branch
          %408 = sbr.rel (%p406) target = $region52
        $region51: #{tpu_custom_call.1} parent=47 // pred_region
          %s409 = sand.u32 %s59, 1
          %s410 = scalar_lea.sflag [#allocation6], %s409
          %s411 = sand.u32 %s59, 1
          %s412 = smul.addr %s411, 4
          %s413 = scalar_lea.vmem [#allocation5], %s412
          %s415 = ssub.s32 64, 64
          %416 = vsyncadd %s410, %s415
          %s417 = sadd.s32 %s36, %s35
          %s418 = smul.addr %s417, 64
          %s419 = scalar_lea.hbm %s0, %s418
          %s421 = sshll.u32 %s413, 4
          %s422 = int_to_ptr.vmem [resolvable:$true] %s421
          %424 = dma.hbm_to_vmem [thread:$0]  %s419, 64, %s422, %s410
        $region52: #{tpu_custom_call.1} parent=47 // pred_fallthru
          _
        // Predicated region
        $region53: #{tpu_custom_call.1} parent=47 // pred_check
          %p425 = pneg %p95
        $region54: #{tpu_custom_call.1} parent=47 // pred_check_branch
          %427 = sbr.rel (%p425) target = $region56
        $region55: #{tpu_custom_call.1} parent=47 // pred_region
          %s428 = sand.u32 %s28, 1
          %s429 = scalar_lea.sflag [#allocation9], %s428
          %s430 = sand.u32 %s85, 1
          %s431 = smul.addr %s430, 4
          %s432 = scalar_lea.vmem [#allocation8], %s431
          %s434 = ssub.s32 64, 64
          %435 = vsyncadd %s429, %s434
          %s436 = smul.addr %s35, 64
          %s437 = scalar_lea.hbm %s1, %s436
          %s439 = sshll.u32 %s432, 4
          %s440 = int_to_ptr.vmem [resolvable:$true] %s439
          %442 = dma.hbm_to_vmem [thread:$0]  %s437, 64, %s440, %s429
        $region56: #{tpu_custom_call.1} parent=47 // pred_fallthru
          _
        // Predicated region
        $region57: #{tpu_custom_call.1} parent=47 // pred_check
          %p443 = pneg %p121
        $region58: #{tpu_custom_call.1} parent=47 // pred_check_branch
          %445 = sbr.rel (%p443) target = $region60
        $region59: #{tpu_custom_call.1} parent=47 // pred_region
          %s446 = sand.u32 %s28, 1
          %s447 = scalar_lea.sflag [#allocation9], %s446
          %s448 = sand.u32 %s111, 1
          %s449 = smul.addr %s448, 4
          %s450 = scalar_lea.vmem [#allocation10], %s449
          %s452 = ssub.s32 64, 64
          %453 = vsyncadd %s447, %s452
          %s454 = smul.addr %s35, 64
          %s455 = scalar_lea.hbm %s2, %s454
          %s457 = sshll.u32 %s450, 4
          %s458 = int_to_ptr.vmem [resolvable:$true] %s457
          %460 = dma.hbm_to_vmem [thread:$0]  %s455, 64, %s458, %s447
        $region60: #{tpu_custom_call.1} parent=47 // pred_fallthru
          _
      $region48: #{tpu_custom_call.1} parent=5 // pred_fallthru
        _
      %p461 = scmp.le.s32.totalorder 1, %s28
      %p462 = scmp.lt.s32.totalorder %s28, 3
      %p463 = pnand %p461, %p462
      %p464 = pneg %p463
      // Predicated region
      $region61: #{tpu_custom_call.1} parent=5 // pred_check
        _
      $region62: #{tpu_custom_call.1} parent=5 // pred_check_branch
        %466 = sbr.rel (%p463) target = $region64
      $region63: #{tpu_custom_call.1} parent=5 // pred_region
        %s467 = ssub.s32 %s28, 1
        %s468 = sand.u32 %s62, 1
        %s469 = scalar_lea.sflag [#allocation6], %s468
        %s470 = sand.u32 %s62, 1
        %s471 = smul.addr %s470, 4
        %s472 = scalar_lea.vmem [#allocation5], %s471
        // Predicated region
        $region65: #{tpu_custom_call.1} parent=63 // pred_check
          %p473 = pneg %p75
        $region66: #{tpu_custom_call.1} parent=63 // pred_check_branch
          %475 = sbr.rel (%p473) target = $region68
        $region67: #{tpu_custom_call.1} parent=63 // pred_region
          %476 = dma.done %s469, 64
        $region68: #{tpu_custom_call.1} parent=63 // pred_fallthru
          _
        %s477 = sand.u32 %s33, 1
        %s478 = scalar_lea.sflag [#allocation9], %s477
        %s479 = sand.u32 %s88, 1
        %s480 = smul.addr %s479, 4
        %s481 = scalar_lea.vmem [#allocation8], %s480
        // Predicated region
        $region69: #{tpu_custom_call.1} parent=63 // pred_check
          %p482 = pneg %p101
        $region70: #{tpu_custom_call.1} parent=63 // pred_check_branch
          %484 = sbr.rel (%p482) target = $region72
        $region71: #{tpu_custom_call.1} parent=63 // pred_region
          %485 = dma.done %s478, 64
        $region72: #{tpu_custom_call.1} parent=63 // pred_fallthru
          _
        %s486 = sand.u32 %s33, 1
        %s487 = scalar_lea.sflag [#allocation9], %s486
        %s488 = sand.u32 %s114, 1
        %s489 = smul.addr %s488, 4
        %s490 = scalar_lea.vmem [#allocation10], %s489
        // Predicated region
        $region73: #{tpu_custom_call.1} parent=63 // pred_check
          %p491 = pneg %p127
        $region74: #{tpu_custom_call.1} parent=63 // pred_check_branch
          %493 = sbr.rel (%p491) target = $region76
        $region75: #{tpu_custom_call.1} parent=63 // pred_region
          %494 = dma.done %s487, 64
        $region76: #{tpu_custom_call.1} parent=63 // pred_fallthru
          _
        // Predicated region
        $region77: #{tpu_custom_call.1} parent=63 // pred_check
          %p495 = pneg %p148
        $region78: #{tpu_custom_call.1} parent=63 // pred_check_branch
          %497 = sbr.rel (%p495) target = $region80
        $region79: #{tpu_custom_call.1} parent=63 // pred_region
          %498 = dma.done [#allocation12], 1024
        $region80: #{tpu_custom_call.1} parent=63 // pred_fallthru
          _
        // Predicated region
        $region81: #{tpu_custom_call.1} parent=63 // pred_check
          %p499 = pneg %p190
        $region82: #{tpu_custom_call.1} parent=63 // pred_check_branch
          %501 = sbr.rel (%p499) target = $region84
        $region83: #{tpu_custom_call.1} parent=63 // pred_region
          %502 = dma.done [#allocation12], 1024
        $region84: #{tpu_custom_call.1} parent=63 // pred_fallthru
          _
        // Predicated region
        $region85: #{tpu_custom_call.1} parent=63 // pred_check
          %p503 = pneg %p232
        $region86: #{tpu_custom_call.1} parent=63 // pred_check_branch
          %505 = sbr.rel (%p503) target = $region88
        $region87: #{tpu_custom_call.1} parent=63 // pred_region
          %506 = dma.done [#allocation15], 1024
        $region88: #{tpu_custom_call.1} parent=63 // pred_fallthru
          _
        // Predicated region
        $region89: #{tpu_custom_call.1} parent=63 // pred_check
          %p507 = pneg %p274
        $region90: #{tpu_custom_call.1} parent=63 // pred_check_branch
          %509 = sbr.rel (%p507) target = $region92
        $region91: #{tpu_custom_call.1} parent=63 // pred_region
          %510 = dma.done [#allocation15], 1024
        $region92: #{tpu_custom_call.1} parent=63 // pred_fallthru
          _
        %s511 = sand.u32 %s62, 1
        %s512 = scalar_lea.sflag [#allocation6], %s511
        %s513 = sand.u32 %s62, 1
        %s514 = smul.addr %s513, 4
        %s515 = scalar_lea.vmem [#allocation5], %s514
        %p516 = pneg %p75
        %p517 = pneg %p72
        %s518 = sand.u32 %s33, 1
        %s519 = scalar_lea.sflag [#allocation9], %s518
        %s520 = sand.u32 %s88, 1
        %s521 = smul.addr %s520, 4
        %s522 = scalar_lea.vmem [#allocation8], %s521
        %p523 = pneg %p101
        %p524 = pneg %p98
        %s525 = sand.u32 %s33, 1
        %s526 = scalar_lea.sflag [#allocation9], %s525
        %s527 = sand.u32 %s114, 1
        %s528 = smul.addr %s527, 4
        %s529 = scalar_lea.vmem [#allocation10], %s528
        %p530 = pneg %p127
        %p531 = pneg %p124
        %p532 = pneg %p148
        %p533 = pneg %p145
        %p534 = pneg %p169
        %p535 = pneg %p166
        %p536 = pneg %p190
        %p537 = pneg %p187
        %p538 = pneg %p211
        %p539 = pneg %p208
        %p540 = pneg %p232
        %p541 = pneg %p229
        %p542 = pneg %p253
        %p543 = pneg %p250
        %p544 = pneg %p274
        %p545 = pneg %p271
        %p546 = pneg %p295
        %p547 = pneg %p292
        %p548 = pneg %p323
        %p549 = pneg %p320
        %s550 = sand.u32 %s310, 1
        %s551 = scalar_lea.sflag [#allocation7], %s550
        %s552 = sand.u32 %s310, 1
        %s553 = smul.addr %s552, 8
        %s554 = scalar_lea.vmem [#allocation17], %s553
        %p556 = scmp.eq.s32.totalorder %s40, 0
        // Predicated region
        $region93: #{tpu_custom_call.1} parent=63 // pred_check
          %p557 = pneg %p556
        $region94: #{tpu_custom_call.1} parent=63 // pred_check_branch
          %559 = sbr.rel (%p557) target = $region96
        $region95: #{tpu_custom_call.1} parent=63 // pred_region
          %560 = vst [vmem:[#allocation2] sm:$0xff] 0.0
        $region96: #{tpu_custom_call.1} parent=63 // pred_fallthru
          _
        %v561 = vld [vmem:[%s472] sm:$0xf]
        %p562 = scmp.eq.s32.totalorder %s39, 0
        // Predicated region
        $region97: #{tpu_custom_call.1} parent=63 // pred_check
          %p563 = pneg %p562
        $region98: #{tpu_custom_call.1} parent=63 // pred_check_branch
          %565 = sbr.rel (%p563) target = $region100
        $region99: #{tpu_custom_call.1} parent=63 // pred_region
          %v566 = vld [vmem:[%s481] sm:$0xf]
          %v567 = vld [vmem:[%s490] sm:$0xf]
          %s568 = smul.u32 %s40, 16
          %s569 = smul.addr %s568, 4
          %s570 = scalar_lea.vmem [#allocation13], %s569
          %v571 = vld [vmem:[%s570] sm:$0xf]
          %v572 = vld [vmem:[%s570 + $0x4] sm:$0xf]
          %v573 = vld [vmem:[%s570 + $0x8] sm:$0xf]
          %v574 = vld [vmem:[%s570 + $0xc] sm:$0xf]
          %v575 = vld [vmem:[%s570 + $0x10] sm:$0xf]
          %v576 = vld [vmem:[%s570 + $0x14] sm:$0xf]
          %v577 = vld [vmem:[%s570 + $0x18] sm:$0xf]
          %v578 = vld [vmem:[%s570 + $0x1c] sm:$0xf]
          %v579 = vld [vmem:[%s570 + $0x20] sm:$0xf]
          %v580 = vld [vmem:[%s570 + $0x24] sm:$0xf]
          %v581 = vld [vmem:[%s570 + $0x28] sm:$0xf]
          %v582 = vld [vmem:[%s570 + $0x2c] sm:$0xf]
          %v583 = vld [vmem:[%s570 + $0x30] sm:$0xf]
          %v584 = vld [vmem:[%s570 + $0x34] sm:$0xf]
          %v585 = vld [vmem:[%s570 + $0x38] sm:$0xf]
          %v586 = vld [vmem:[%s570 + $0x3c] sm:$0xf]
          %s587 = smul.addr %s568, 4
          %s588 = scalar_lea.vmem [#allocation14], %s587
          %v589 = vld [vmem:[%s588] sm:$0xf]
          %v590 = vld [vmem:[%s588 + $0x4] sm:$0xf]
          %v591 = vld [vmem:[%s588 + $0x8] sm:$0xf]
          %v592 = vld [vmem:[%s588 + $0xc] sm:$0xf]
          %v593 = vld [vmem:[%s588 + $0x10] sm:$0xf]
          %v594 = vld [vmem:[%s588 + $0x14] sm:$0xf]
          %v595 = vld [vmem:[%s588 + $0x18] sm:$0xf]
          %v596 = vld [vmem:[%s588 + $0x1c] sm:$0xf]
          %v597 = vld [vmem:[%s588 + $0x20] sm:$0xf]
          %v598 = vld [vmem:[%s588 + $0x24] sm:$0xf]
          %v599 = vld [vmem:[%s588 + $0x28] sm:$0xf]
          %v600 = vld [vmem:[%s588 + $0x2c] sm:$0xf]
          %v601 = vld [vmem:[%s588 + $0x30] sm:$0xf]
          %v602 = vld [vmem:[%s588 + $0x34] sm:$0xf]
          %v603 = vld [vmem:[%s588 + $0x38] sm:$0xf]
          %v604 = vld [vmem:[%s588 + $0x3c] sm:$0xf]
          %s605 = scalar_lea.vmem %s6, %s40
          %v606 = vld [vmem:[%s605] sm:$0x1]
          %v608 = vlaneseq
          %v609 = vshrl.u32 %v608, 7
          %v610 = vsub.s32 0, %v609
          %v611 = vrot.slane %v606, %v610
          %v629 = vunpack.c.l.b16 %v571
          %v630 = vunpack.c.l.b16 %v572
          %v631 = vunpack.c.l.b16 %v573
          %v632 = vunpack.c.l.b16 %v574
          %v633 = vunpack.c.l.b16 %v575
          %v634 = vunpack.c.l.b16 %v576
          %v635 = vunpack.c.l.b16 %v577
          %v636 = vunpack.c.l.b16 %v578
          %v637 = vunpack.c.l.b16 %v579
          %v638 = vunpack.c.l.b16 %v580
          %v639 = vunpack.c.l.b16 %v581
          %v640 = vunpack.c.l.b16 %v582
          %v641 = vunpack.c.l.b16 %v583
          %v642 = vunpack.c.l.b16 %v584
          %v643 = vunpack.c.l.b16 %v585
          %v644 = vunpack.c.l.b16 %v586
          %v645 = vpack.c.b16 %v630, %v629
          %v646 = vpack.c.b16 %v632, %v631
          %v647 = vpack.c.b16 %v634, %v633
          %v648 = vpack.c.b16 %v636, %v635
          %v649 = vpack.c.b16 %v638, %v637
          %v650 = vpack.c.b16 %v640, %v639
          %v651 = vpack.c.b16 %v642, %v641
          %v652 = vpack.c.b16 %v644, %v643
          %661 = vmatprep.subr.bf16.mxu0 0
          %662 = vmatpush1.bf16.msra.mxu0 %v652
          %663 = vmatprep.subr.bf16.mxu0 0
          %664 = vmatpush1.bf16.msra.mxu0 %v651
          %665 = vmatprep.subr.bf16.mxu0 0
          %666 = vmatpush1.bf16.msra.mxu0 %v650
          %667 = vmatprep.subr.bf16.mxu0 0
          %668 = vmatpush1.bf16.msra.mxu0 %v649
          %669 = vmatprep.subr.bf16.mxu0 0
          %670 = vmatpush1.bf16.msra.mxu0 %v648
          %671 = vmatprep.subr.bf16.mxu0 0
          %672 = vmatpush1.bf16.msra.mxu0 %v647
          %673 = vmatprep.subr.bf16.mxu0 0
          %674 = vmatpush1.bf16.msra.mxu0 %v646
          %675 = vmatprep.subr.bf16.mxu0 0
          %676 = vmatpush1.bf16.msra.mxu0 %v645
          %677 = vmatprep.subr.bf16.mxu0 0
          %678 = vmatpush2.bf16.msra.mxu0 0
          %679 = vmatprep.subr.bf16.mxu0 0
          %680 = vmatpush2.bf16.msra.mxu0 0
          %681 = vmatprep.subr.bf16.mxu0 0
          %682 = vmatpush2.bf16.msra.mxu0 0
          %683 = vmatprep.subr.bf16.mxu0 0
          %684 = vmatpush2.bf16.msra.mxu0 0
          %685 = vmatprep.subr.bf16.mxu0 0
          %686 = vmatpush2.bf16.msra.mxu0 0
          %687 = vmatprep.subr.bf16.mxu0 0
          %688 = vmatpush2.bf16.msra.mxu0 0
          %689 = vmatprep.subr.bf16.mxu0 0
          %690 = vmatpush2.bf16.msra.mxu0 0
          %691 = vmatprep.subr.bf16.mxu0 0
          %692 = vmatpush2.bf16.msra.mxu0 0
          %693 = vmatprep.mubr.bf16.mxu0 0
          %694 = vmatmul.mubr.bf16.gmra.mxu0 %v566
          %v695 = vpop.f32.mrf.mxu0
          %v696 = vadd.f32 %v611, %v695
          %v697 = vpop.f32.mrf.mxu0
          %v698 = vpop.f32.mrf.mxu0
          %v699 = vpop.f32.mrf.mxu0
          %700 = vdwg.mxu0
          %s701 = scalar_lea.vmem %s8, %s40
          %v702 = vld [vmem:[%s701] sm:$0x1]
          %v704 = vlaneseq
          %v705 = vshrl.u32 %v704, 7
          %v706 = vsub.s32 0, %v705
          %v707 = vrot.slane %v702, %v706
          %v725 = vunpack.c.l.b16 %v589
          %v726 = vunpack.c.l.b16 %v590
          %v727 = vunpack.c.l.b16 %v591
          %v728 = vunpack.c.l.b16 %v592
          %v729 = vunpack.c.l.b16 %v593
          %v730 = vunpack.c.l.b16 %v594
          %v731 = vunpack.c.l.b16 %v595
          %v732 = vunpack.c.l.b16 %v596
          %v733 = vunpack.c.l.b16 %v597
          %v734 = vunpack.c.l.b16 %v598
          %v735 = vunpack.c.l.b16 %v599
          %v736 = vunpack.c.l.b16 %v600
          %v737 = vunpack.c.l.b16 %v601
          %v738 = vunpack.c.l.b16 %v602
          %v739 = vunpack.c.l.b16 %v603
          %v740 = vunpack.c.l.b16 %v604
          %v741 = vpack.c.b16 %v726, %v725
          %v742 = vpack.c.b16 %v728, %v727
          %v743 = vpack.c.b16 %v730, %v729
          %v744 = vpack.c.b16 %v732, %v731
          %v745 = vpack.c.b16 %v734, %v733
          %v746 = vpack.c.b16 %v736, %v735
          %v747 = vpack.c.b16 %v738, %v737
          %v748 = vpack.c.b16 %v740, %v739
          %757 = vmatprep.subr.bf16.mxu0 0
          %758 = vmatpush1.bf16.msra.mxu0 %v748
          %759 = vmatprep.subr.bf16.mxu0 0
          %760 = vmatpush1.bf16.msra.mxu0 %v747
          %761 = vmatprep.subr.bf16.mxu0 0
          %762 = vmatpush1.bf16.msra.mxu0 %v746
          %763 = vmatprep.subr.bf16.mxu0 0
          %764 = vmatpush1.bf16.msra.mxu0 %v745
          %765 = vmatprep.subr.bf16.mxu0 0
          %766 = vmatpush1.bf16.msra.mxu0 %v744
          %767 = vmatprep.subr.bf16.mxu0 0
          %768 = vmatpush1.bf16.msra.mxu0 %v743
          %769 = vmatprep.subr.bf16.mxu0 0
          %770 = vmatpush1.bf16.msra.mxu0 %v742
          %771 = vmatprep.subr.bf16.mxu0 0
          %772 = vmatpush1.bf16.msra.mxu0 %v741
          %773 = vmatprep.subr.bf16.mxu0 0
          %774 = vmatpush2.bf16.msra.mxu0 0
          %775 = vmatprep.subr.bf16.mxu0 0
          %776 = vmatpush2.bf16.msra.mxu0 0
          %777 = vmatprep.subr.bf16.mxu0 0
          %778 = vmatpush2.bf16.msra.mxu0 0
          %779 = vmatprep.subr.bf16.mxu0 0
          %780 = vmatpush2.bf16.msra.mxu0 0
          %781 = vmatprep.subr.bf16.mxu0 0
          %782 = vmatpush2.bf16.msra.mxu0 0
          %783 = vmatprep.subr.bf16.mxu0 0
          %784 = vmatpush2.bf16.msra.mxu0 0
          %785 = vmatprep.subr.bf16.mxu0 0
          %786 = vmatpush2.bf16.msra.mxu0 0
          %787 = vmatprep.subr.bf16.mxu0 0
          %788 = vmatpush2.bf16.msra.mxu0 0
          %789 = vmatprep.mubr.bf16.mxu0 0
          %790 = vmatmul.mubr.bf16.gmra.mxu0 %v567
          %v791 = vpop.f32.mrf.mxu0
          %v792 = vadd.f32 %v707, %v791
          %v793 = vpop.f32.mrf.mxu0
          %v794 = vpop.f32.mrf.mxu0
          %v795 = vpop.f32.mrf.mxu0
          %796 = vdwg.mxu0
          %v797 = vpack.c.bf16 %v696, %v696
          %s798 = smul.addr %s40, 4
          %s799 = scalar_lea.vmem [#allocation3], %s798
          %800 = vst [vmem:[%s799] sm:$0xf] %v797
          %v801 = vpack.c.bf16 %v792, %v792
          %s802 = smul.addr %s40, 4
          %s803 = scalar_lea.vmem [#allocation4], %s802
          %804 = vst [vmem:[%s803] sm:$0xf] %v801
        $region100: #{tpu_custom_call.1} parent=63 // pred_fallthru
          _
        %s805 = smul.u32 %s40, 16
        %s806 = smul.addr %s805, 4
        %s807 = scalar_lea.vmem [#allocation11], %s806
        %v808 = vld [vmem:[%s807] sm:$0xf]
        %v809 = vld [vmem:[%s807 + $0x4] sm:$0xf]
        %v810 = vld [vmem:[%s807 + $0x8] sm:$0xf]
        %v811 = vld [vmem:[%s807 + $0xc] sm:$0xf]
        %v812 = vld [vmem:[%s807 + $0x10] sm:$0xf]
        %v813 = vld [vmem:[%s807 + $0x14] sm:$0xf]
        %v814 = vld [vmem:[%s807 + $0x18] sm:$0xf]
        %v815 = vld [vmem:[%s807 + $0x1c] sm:$0xf]
        %v816 = vld [vmem:[%s807 + $0x20] sm:$0xf]
        %v817 = vld [vmem:[%s807 + $0x24] sm:$0xf]
        %v818 = vld [vmem:[%s807 + $0x28] sm:$0xf]
        %v819 = vld [vmem:[%s807 + $0x2c] sm:$0xf]
        %v820 = vld [vmem:[%s807 + $0x30] sm:$0xf]
        %v821 = vld [vmem:[%s807 + $0x34] sm:$0xf]
        %v822 = vld [vmem:[%s807 + $0x38] sm:$0xf]
        %v823 = vld [vmem:[%s807 + $0x3c] sm:$0xf]
        %s824 = scalar_lea.vmem %s4, %s40
        %v825 = vld [vmem:[%s824] sm:$0x1]
        %v827 = vlaneseq
        %v828 = vshrl.u32 %v827, 7
        %v829 = vsub.s32 0, %v828
        %v830 = vrot.slane %v825, %v829
        %v848 = vunpack.c.l.b16 %v808
        %v849 = vunpack.c.l.b16 %v809
        %v850 = vunpack.c.l.b16 %v810
        %v851 = vunpack.c.l.b16 %v811
        %v852 = vunpack.c.l.b16 %v812
        %v853 = vunpack.c.l.b16 %v813
        %v854 = vunpack.c.l.b16 %v814
        %v855 = vunpack.c.l.b16 %v815
        %v856 = vunpack.c.l.b16 %v816
        %v857 = vunpack.c.l.b16 %v817
        %v858 = vunpack.c.l.b16 %v818
        %v859 = vunpack.c.l.b16 %v819
        %v860 = vunpack.c.l.b16 %v820
        %v861 = vunpack.c.l.b16 %v821
        %v862 = vunpack.c.l.b16 %v822
        %v863 = vunpack.c.l.b16 %v823
        %v864 = vpack.c.b16 %v849, %v848
        %v865 = vpack.c.b16 %v851, %v850
        %v866 = vpack.c.b16 %v853, %v852
        %v867 = vpack.c.b16 %v855, %v854
        %v868 = vpack.c.b16 %v857, %v856
        %v869 = vpack.c.b16 %v859, %v858
        %v870 = vpack.c.b16 %v861, %v860
        %v871 = vpack.c.b16 %v863, %v862
        %880 = vmatprep.subr.bf16.mxu0 0
        %881 = vmatpush1.bf16.msra.mxu0 %v871
        %882 = vmatprep.subr.bf16.mxu0 0
        %883 = vmatpush1.bf16.msra.mxu0 %v870
        %884 = vmatprep.subr.bf16.mxu0 0
        %885 = vmatpush1.bf16.msra.mxu0 %v869
        %886 = vmatprep.subr.bf16.mxu0 0
        %887 = vmatpush1.bf16.msra.mxu0 %v868
        %888 = vmatprep.subr.bf16.mxu0 0
        %889 = vmatpush1.bf16.msra.mxu0 %v867
        %890 = vmatprep.subr.bf16.mxu0 0
        %891 = vmatpush1.bf16.msra.mxu0 %v866
        %892 = vmatprep.subr.bf16.mxu0 0
        %893 = vmatpush1.bf16.msra.mxu0 %v865
        %894 = vmatprep.subr.bf16.mxu0 0
        %895 = vmatpush1.bf16.msra.mxu0 %v864
        %896 = vmatprep.subr.bf16.mxu0 0
        %897 = vmatpush2.bf16.msra.mxu0 0
        %898 = vmatprep.subr.bf16.mxu0 0
        %899 = vmatpush2.bf16.msra.mxu0 0
        %900 = vmatprep.subr.bf16.mxu0 0
        %901 = vmatpush2.bf16.msra.mxu0 0
        %902 = vmatprep.subr.bf16.mxu0 0
        %903 = vmatpush2.bf16.msra.mxu0 0
        %904 = vmatprep.subr.bf16.mxu0 0
        %905 = vmatpush2.bf16.msra.mxu0 0
        %906 = vmatprep.subr.bf16.mxu0 0
        %907 = vmatpush2.bf16.msra.mxu0 0
        %908 = vmatprep.subr.bf16.mxu0 0
        %909 = vmatpush2.bf16.msra.mxu0 0
        %910 = vmatprep.subr.bf16.mxu0 0
        %911 = vmatpush2.bf16.msra.mxu0 0
        %912 = vmatprep.mubr.bf16.mxu0 0
        %913 = vmatmul.mubr.bf16.gmra.mxu0 %v561
        %v914 = vpop.f32.mrf.mxu0
        %v915 = vadd.f32 %v830, %v914
        %v916 = vpop.f32.mrf.mxu0
        %v917 = vpop.f32.mrf.mxu0
        %v918 = vpop.f32.mrf.mxu0
        %919 = vdwg.mxu0
        %v920 = vmul.f32 %v915, 0.17677669
        %v921 = vpack.c.bf16 %v920, %v920
        %s922 = smul.addr %s40, 4
        %s923 = scalar_lea.vmem [#allocation3], %s922
        %v924 = vld [vmem:[%s923] sm:$0xf]
        %s925 = smul.addr %s40, 4
        %s926 = scalar_lea.vmem [#allocation4], %s925
        %v927 = vld [vmem:[%s926] sm:$0xf]
        %vm928 = vcmask 261120
        %v930 = vsel %vm928, %v921, 0
        %v933 = vsel %vm928, %v924, 0
        %935 = vmatprep.subr.bf16.mxu0 0
        %936 = vmatpush1.bf16.xpose.msra.mxu0 0
        %937 = vmatprep.subr.bf16.mxu0 0
        %938 = vmatpush1.bf16.xpose.msra.mxu0 0
        %939 = vmatprep.subr.bf16.mxu0 0
        %940 = vmatpush1.bf16.xpose.msra.mxu0 0
        %941 = vmatprep.subr.bf16.mxu0 0
        %942 = vmatpush1.bf16.xpose.msra.mxu0 0
        %943 = vmatprep.subr.bf16.mxu0 0
        %944 = vmatpush1.bf16.xpose.msra.mxu0 0
        %945 = vmatprep.subr.bf16.mxu0 0
        %946 = vmatpush1.bf16.xpose.msra.mxu0 0
        %947 = vmatprep.subr.bf16.mxu0 0
        %948 = vmatpush1.bf16.xpose.msra.mxu0 0
        %949 = vmatprep.subr.bf16.mxu0 0
        %950 = vmatpush1.bf16.xpose.msra.mxu0 %v933
        %951 = vmatprep.subr.bf16.mxu0 0
        %952 = vmatpush2.bf16.xpose.msra.mxu0 0
        %953 = vmatprep.subr.bf16.mxu0 0
        %954 = vmatpush2.bf16.xpose.msra.mxu0 0
        %955 = vmatprep.subr.bf16.mxu0 0
        %956 = vmatpush2.bf16.xpose.msra.mxu0 0
        %957 = vmatprep.subr.bf16.mxu0 0
        %958 = vmatpush2.bf16.xpose.msra.mxu0 0
        %959 = vmatprep.subr.bf16.mxu0 0
        %960 = vmatpush2.bf16.xpose.msra.mxu0 0
        %961 = vmatprep.subr.bf16.mxu0 0
        %962 = vmatpush2.bf16.xpose.msra.mxu0 0
        %963 = vmatprep.subr.bf16.mxu0 0
        %964 = vmatpush2.bf16.xpose.msra.mxu0 0
        %965 = vmatprep.subr.bf16.mxu0 0
        %966 = vmatpush2.bf16.xpose.msra.mxu0 0
        %967 = vmatprep.mubr.bf16.mxu0 0
        %968 = vmatmul.mubr.bf16.gmra.mxu0 %v930
        %v969 = vpop.f32.mrf.mxu0
        %v970 = vadd.f32 0.0, %v969
        %v971 = vpop.f32.mrf.mxu0
        %v972 = vpop.f32.mrf.mxu0
        %v973 = vpop.f32.mrf.mxu0
        %974 = vdwg.mxu0
        %vm975 = vcmask 64512
        %v976 = vsel %vm975, %v970, -inf
        %977 = vmax.xlane.f32.xlu0 %v976
        %v978 = vpop.xlane.xlu0 %977
        %v979 = vsub.f32 %v970, %v978
        %v980 = vmul.f32 %v979, 1.442695
        %v981 = vpow.pop %v980
        %v982 = vsel %vm975, %v981, 0.0
        %983 = vadd.xlane.f32.xlu0 %v982
        %v984 = vpop.xlane.xlu0 %983
        %v985 = vrcp.pop %v984
        %v986 = vmul.f32 %v981, %v985
        %v987 = vpack.c.bf16 %v986, %v986
        %v989 = vsel %vm975, %v987, 0
        %vm991 = vcmask 1043456
        %v993 = vsel %vm991, %v927, 0
        %995 = vmatprep.subr.bf16.mxu0 0
        %996 = vmatpush1.bf16.msra.mxu0 0
        %997 = vmatprep.subr.bf16.mxu0 0
        %998 = vmatpush1.bf16.msra.mxu0 0
        %999 = vmatprep.subr.bf16.mxu0 0
        %1000 = vmatpush1.bf16.msra.mxu0 0
        %1001 = vmatprep.subr.bf16.mxu0 0
        %1002 = vmatpush1.bf16.msra.mxu0 0
        %1003 = vmatprep.subr.bf16.mxu0 0
        %1004 = vmatpush1.bf16.msra.mxu0 0
        %1005 = vmatprep.subr.bf16.mxu0 0
        %1006 = vmatpush1.bf16.msra.mxu0 0
        %1007 = vmatprep.subr.bf16.mxu0 0
        %1008 = vmatpush1.bf16.msra.mxu0 0
        %1009 = vmatprep.subr.bf16.mxu0 0
        %1010 = vmatpush1.bf16.msra.mxu0 %v993
        %1011 = vmatprep.subr.bf16.mxu0 0
        %1012 = vmatpush2.bf16.msra.mxu0 0
        %1013 = vmatprep.subr.bf16.mxu0 0
        %1014 = vmatpush2.bf16.msra.mxu0 0
        %1015 = vmatprep.subr.bf16.mxu0 0
        %1016 = vmatpush2.bf16.msra.mxu0 0
        %1017 = vmatprep.subr.bf16.mxu0 0
        %1018 = vmatpush2.bf16.msra.mxu0 0
        %1019 = vmatprep.subr.bf16.mxu0 0
        %1020 = vmatpush2.bf16.msra.mxu0 0
        %1021 = vmatprep.subr.bf16.mxu0 0
        %1022 = vmatpush2.bf16.msra.mxu0 0
        %1023 = vmatprep.subr.bf16.mxu0 0
        %1024 = vmatpush2.bf16.msra.mxu0 0
        %1025 = vmatprep.subr.bf16.mxu0 0
        %1026 = vmatpush2.bf16.msra.mxu0 0
        %1027 = vmatprep.mubr.bf16.mxu0 0
        %1028 = vmatmul.mubr.bf16.gmra.mxu0 %v989
        %v1029 = vpop.f32.mrf.mxu0
        %v1030 = vadd.f32 0.0, %v1029
        %v1031 = vpop.f32.mrf.mxu0
        %v1032 = vpop.f32.mrf.mxu0
        %v1033 = vpop.f32.mrf.mxu0
        %1034 = vdwg.mxu0
        %1036 = vrot.lane.b32.xlu0 %v921, 96
        %v1037 = vpop.permute.xlu0 %1036
        %v1039 = vunpack.c.l.b16 %v924
        %v1040 = vpack.c.b16 %v1039, %v1039
        %1041 = vrot.lane.b32.xlu0 %v1040, 96
        %v1042 = vpop.permute.xlu0 %1041
        %v1044 = vsel %vm928, %v1037, 0
        %v1047 = vsel %vm928, %v1042, 0
        %1049 = vmatprep.subr.bf16.mxu0 0
        %1050 = vmatpush1.bf16.xpose.msra.mxu0 0
        %1051 = vmatprep.subr.bf16.mxu0 0
        %1052 = vmatpush1.bf16.xpose.msra.mxu0 0
        %1053 = vmatprep.subr.bf16.mxu0 0
        %1054 = vmatpush1.bf16.xpose.msra.mxu0 0
        %1055 = vmatprep.subr.bf16.mxu0 0
        %1056 = vmatpush1.bf16.xpose.msra.mxu0 0
        %1057 = vmatprep.subr.bf16.mxu0 0
        %1058 = vmatpush1.bf16.xpose.msra.mxu0 0
        %1059 = vmatprep.subr.bf16.mxu0 0
        %1060 = vmatpush1.bf16.xpose.msra.mxu0 0
        %1061 = vmatprep.subr.bf16.mxu0 0
        %1062 = vmatpush1.bf16.xpose.msra.mxu0 0
        %1063 = vmatprep.subr.bf16.mxu0 0
        %1064 = vmatpush1.bf16.xpose.msra.mxu0 %v1047
        %1065 = vmatprep.subr.bf16.mxu0 0
        %1066 = vmatpush2.bf16.xpose.msra.mxu0 0
        %1067 = vmatprep.subr.bf16.mxu0 0
        %1068 = vmatpush2.bf16.xpose.msra.mxu0 0
        %1069 = vmatprep.subr.bf16.mxu0 0
        %1070 = vmatpush2.bf16.xpose.msra.mxu0 0
        %1071 = vmatprep.subr.bf16.mxu0 0
        %1072 = vmatpush2.bf16.xpose.msra.mxu0 0
        %1073 = vmatprep.subr.bf16.mxu0 0
        %1074 = vmatpush2.bf16.xpose.msra.mxu0 0
        %1075 = vmatprep.subr.bf16.mxu0 0
        %1076 = vmatpush2.bf16.xpose.msra.mxu0 0
        %1077 = vmatprep.subr.bf16.mxu0 0
        %1078 = vmatpush2.bf16.xpose.msra.mxu0 0
        %1079 = vmatprep.subr.bf16.mxu0 0
        %1080 = vmatpush2.bf16.xpose.msra.mxu0 0
        %1081 = vmatprep.mubr.bf16.mxu0 0
        %1082 = vmatmul.mubr.bf16.gmra.mxu0 %v1044
        %v1083 = vpop.f32.mrf.mxu0
        %v1084 = vadd.f32 0.0, %v1083
        %v1085 = vpop.f32.mrf.mxu0
        %v1086 = vpop.f32.mrf.mxu0
        %v1087 = vpop.f32.mrf.mxu0
        %1088 = vdwg.mxu0
        %v1089 = vsel %vm975, %v1084, -inf
        %1090 = vmax.xlane.f32.xlu0 %v1089
        %v1091 = vpop.xlane.xlu0 %1090
        %v1092 = vsub.f32 %v1084, %v1091
        %v1093 = vmul.f32 %v1092, 1.442695
        %v1094 = vpow.pop %v1093
        %v1095 = vsel %vm975, %v1094, 0.0
        %1096 = vadd.xlane.f32.xlu0 %v1095
        %v1097 = vpop.xlane.xlu0 %1096
        %v1098 = vrcp.pop %v1097
        %v1099 = vmul.f32 %v1094, %v1098
        %v1100 = vpack.c.bf16 %v1099, %v1099
        %v1102 = vunpack.c.l.b16 %v927
        %v1103 = vpack.c.b16 %v1102, %v1102
        %1104 = vrot.lane.b32.xlu0 %v1103, 96
        %v1105 = vpop.permute.xlu0 %1104
        %v1107 = vsel %vm975, %v1100, 0
        %v1110 = vsel %vm991, %v1105, 0
        %1112 = vmatprep.subr.bf16.mxu0 0
        %1113 = vmatpush1.bf16.msra.mxu0 0
        %1114 = vmatprep.subr.bf16.mxu0 0
        %1115 = vmatpush1.bf16.msra.mxu0 0
        %1116 = vmatprep.subr.bf16.mxu0 0
        %1117 = vmatpush1.bf16.msra.mxu0 0
        %1118 = vmatprep.subr.bf16.mxu0 0
        %1119 = vmatpush1.bf16.msra.mxu0 0
        %1120 = vmatprep.subr.bf16.mxu0 0
        %1121 = vmatpush1.bf16.msra.mxu0 0
        %1122 = vmatprep.subr.bf16.mxu0 0
        %1123 = vmatpush1.bf16.msra.mxu0 0
        %1124 = vmatprep.subr.bf16.mxu0 0
        %1125 = vmatpush1.bf16.msra.mxu0 0
        %1126 = vmatprep.subr.bf16.mxu0 0
        %1127 = vmatpush1.bf16.msra.mxu0 %v1110
        %1128 = vmatprep.subr.bf16.mxu0 0
        %1129 = vmatpush2.bf16.msra.mxu0 0
        %1130 = vmatprep.subr.bf16.mxu0 0
        %1131 = vmatpush2.bf16.msra.mxu0 0
        %1132 = vmatprep.subr.bf16.mxu0 0
        %1133 = vmatpush2.bf16.msra.mxu0 0
        %1134 = vmatprep.subr.bf16.mxu0 0
        %1135 = vmatpush2.bf16.msra.mxu0 0
        %1136 = vmatprep.subr.bf16.mxu0 0
        %1137 = vmatpush2.bf16.msra.mxu0 0
        %1138 = vmatprep.subr.bf16.mxu0 0
        %1139 = vmatpush2.bf16.msra.mxu0 0
        %1140 = vmatprep.subr.bf16.mxu0 0
        %1141 = vmatpush2.bf16.msra.mxu0 0
        %1142 = vmatprep.subr.bf16.mxu0 0
        %1143 = vmatpush2.bf16.msra.mxu0 0
        %1144 = vmatprep.mubr.bf16.mxu0 0
        %1145 = vmatmul.mubr.bf16.gmra.mxu0 %v1107
        %v1146 = vpop.f32.mrf.mxu0
        %v1147 = vadd.f32 0.0, %v1146
        %v1148 = vpop.f32.mrf.mxu0
        %v1149 = vpop.f32.mrf.mxu0
        %v1150 = vpop.f32.mrf.mxu0
        %1151 = vdwg.mxu0
        %1152 = vrot.lane.b32.xlu0 %v921, 64
        %v1153 = vpop.permute.xlu0 %1152
        %1154 = vrot.lane.b32.xlu0 %v1040, 64
        %v1155 = vpop.permute.xlu0 %1154
        %v1157 = vsel %vm928, %v1153, 0
        %v1160 = vsel %vm928, %v1155, 0
        %1162 = vmatprep.subr.bf16.mxu0 0
        %1163 = vmatpush1.bf16.xpose.msra.mxu0 0
        %1164 = vmatprep.subr.bf16.mxu0 0
        %1165 = vmatpush1.bf16.xpose.msra.mxu0 0
        %1166 = vmatprep.subr.bf16.mxu0 0
        %1167 = vmatpush1.bf16.xpose.msra.mxu0 0
        %1168 = vmatprep.subr.bf16.mxu0 0
        %1169 = vmatpush1.bf16.xpose.msra.mxu0 0
        %1170 = vmatprep.subr.bf16.mxu0 0
        %1171 = vmatpush1.bf16.xpose.msra.mxu0 0
        %1172 = vmatprep.subr.bf16.mxu0 0
        %1173 = vmatpush1.bf16.xpose.msra.mxu0 0
        %1174 = vmatprep.subr.bf16.mxu0 0
        %1175 = vmatpush1.bf16.xpose.msra.mxu0 0
        %1176 = vmatprep.subr.bf16.mxu0 0
        %1177 = vmatpush1.bf16.xpose.msra.mxu0 %v1160
        %1178 = vmatprep.subr.bf16.mxu0 0
        %1179 = vmatpush2.bf16.xpose.msra.mxu0 0
        %1180 = vmatprep.subr.bf16.mxu0 0
        %1181 = vmatpush2.bf16.xpose.msra.mxu0 0
        %1182 = vmatprep.subr.bf16.mxu0 0
        %1183 = vmatpush2.bf16.xpose.msra.mxu0 0
        %1184 = vmatprep.subr.bf16.mxu0 0
        %1185 = vmatpush2.bf16.xpose.msra.mxu0 0
        %1186 = vmatprep.subr.bf16.mxu0 0
        %1187 = vmatpush2.bf16.xpose.msra.mxu0 0
        %1188 = vmatprep.subr.bf16.mxu0 0
        %1189 = vmatpush2.bf16.xpose.msra.mxu0 0
        %1190 = vmatprep.subr.bf16.mxu0 0
        %1191 = vmatpush2.bf16.xpose.msra.mxu0 0
        %1192 = vmatprep.subr.bf16.mxu0 0
        %1193 = vmatpush2.bf16.xpose.msra.mxu0 0
        %1194 = vmatprep.mubr.bf16.mxu0 0
        %1195 = vmatmul.mubr.bf16.gmra.mxu0 %v1157
        %v1196 = vpop.f32.mrf.mxu0
        %v1197 = vadd.f32 0.0, %v1196
        %v1198 = vpop.f32.mrf.mxu0
        %v1199 = vpop.f32.mrf.mxu0
        %v1200 = vpop.f32.mrf.mxu0
        %1201 = vdwg.mxu0
        %v1202 = vsel %vm975, %v1197, -inf
        %1203 = vmax.xlane.f32.xlu0 %v1202
        %v1204 = vpop.xlane.xlu0 %1203
        %v1205 = vsub.f32 %v1197, %v1204
        %v1206 = vmul.f32 %v1205, 1.442695
        %v1207 = vpow.pop %v1206
        %v1208 = vsel %vm975, %v1207, 0.0
        %1209 = vadd.xlane.f32.xlu0 %v1208
        %v1210 = vpop.xlane.xlu0 %1209
        %v1211 = vrcp.pop %v1210
        %v1212 = vmul.f32 %v1207, %v1211
        %v1213 = vpack.c.bf16 %v1212, %v1212
        %1214 = vrot.lane.b32.xlu0 %v1103, 64
        %v1215 = vpop.permute.xlu0 %1214
        %v1217 = vsel %vm975, %v1213, 0
        %v1220 = vsel %vm991, %v1215, 0
        %1222 = vmatprep.subr.bf16.mxu0 0
        %1223 = vmatpush1.bf16.msra.mxu0 0
        %1224 = vmatprep.subr.bf16.mxu0 0
        %1225 = vmatpush1.bf16.msra.mxu0 0
        %1226 = vmatprep.subr.bf16.mxu0 0
        %1227 = vmatpush1.bf16.msra.mxu0 0
        %1228 = vmatprep.subr.bf16.mxu0 0
        %1229 = vmatpush1.bf16.msra.mxu0 0
        %1230 = vmatprep.subr.bf16.mxu0 0
        %1231 = vmatpush1.bf16.msra.mxu0 0
        %1232 = vmatprep.subr.bf16.mxu0 0
        %1233 = vmatpush1.bf16.msra.mxu0 0
        %1234 = vmatprep.subr.bf16.mxu0 0
        %1235 = vmatpush1.bf16.msra.mxu0 0
        %1236 = vmatprep.subr.bf16.mxu0 0
        %1237 = vmatpush1.bf16.msra.mxu0 %v1220
        %1238 = vmatprep.subr.bf16.mxu0 0
        %1239 = vmatpush2.bf16.msra.mxu0 0
        %1240 = vmatprep.subr.bf16.mxu0 0
        %1241 = vmatpush2.bf16.msra.mxu0 0
        %1242 = vmatprep.subr.bf16.mxu0 0
        %1243 = vmatpush2.bf16.msra.mxu0 0
        %1244 = vmatprep.subr.bf16.mxu0 0
        %1245 = vmatpush2.bf16.msra.mxu0 0
        %1246 = vmatprep.subr.bf16.mxu0 0
        %1247 = vmatpush2.bf16.msra.mxu0 0
        %1248 = vmatprep.subr.bf16.mxu0 0
        %1249 = vmatpush2.bf16.msra.mxu0 0
        %1250 = vmatprep.subr.bf16.mxu0 0
        %1251 = vmatpush2.bf16.msra.mxu0 0
        %1252 = vmatprep.subr.bf16.mxu0 0
        %1253 = vmatpush2.bf16.msra.mxu0 0
        %1254 = vmatprep.mubr.bf16.mxu0 0
        %1255 = vmatmul.mubr.bf16.gmra.mxu0 %v1217
        %v1256 = vpop.f32.mrf.mxu0
        %v1257 = vadd.f32 0.0, %v1256
        %v1258 = vpop.f32.mrf.mxu0
        %v1259 = vpop.f32.mrf.mxu0
        %v1260 = vpop.f32.mrf.mxu0
        %1261 = vdwg.mxu0
        %1262 = vrot.lane.b32.xlu0 %v921, 32
        %v1263 = vpop.permute.xlu0 %1262
        %1264 = vrot.lane.b32.xlu0 %v1040, 32
        %v1265 = vpop.permute.xlu0 %1264
        %v1267 = vsel %vm928, %v1263, 0
        %v1270 = vsel %vm928, %v1265, 0
        %1272 = vmatprep.subr.bf16.mxu0 0
        %1273 = vmatpush1.bf16.xpose.msra.mxu0 0
        %1274 = vmatprep.subr.bf16.mxu0 0
        %1275 = vmatpush1.bf16.xpose.msra.mxu0 0
        %1276 = vmatprep.subr.bf16.mxu0 0
        %1277 = vmatpush1.bf16.xpose.msra.mxu0 0
        %1278 = vmatprep.subr.bf16.mxu0 0
        %1279 = vmatpush1.bf16.xpose.msra.mxu0 0
        %1280 = vmatprep.subr.bf16.mxu0 0
        %1281 = vmatpush1.bf16.xpose.msra.mxu0 0
        %1282 = vmatprep.subr.bf16.mxu0 0
        %1283 = vmatpush1.bf16.xpose.msra.mxu0 0
        %1284 = vmatprep.subr.bf16.mxu0 0
        %1285 = vmatpush1.bf16.xpose.msra.mxu0 0
        %1286 = vmatprep.subr.bf16.mxu0 0
        %1287 = vmatpush1.bf16.xpose.msra.mxu0 %v1270
        %1288 = vmatprep.subr.bf16.mxu0 0
        %1289 = vmatpush2.bf16.xpose.msra.mxu0 0
        %1290 = vmatprep.subr.bf16.mxu0 0
        %1291 = vmatpush2.bf16.xpose.msra.mxu0 0
        %1292 = vmatprep.subr.bf16.mxu0 0
        %1293 = vmatpush2.bf16.xpose.msra.mxu0 0
        %1294 = vmatprep.subr.bf16.mxu0 0
        %1295 = vmatpush2.bf16.xpose.msra.mxu0 0
        %1296 = vmatprep.subr.bf16.mxu0 0
        %1297 = vmatpush2.bf16.xpose.msra.mxu0 0
        %1298 = vmatprep.subr.bf16.mxu0 0
        %1299 = vmatpush2.bf16.xpose.msra.mxu0 0
        %1300 = vmatprep.subr.bf16.mxu0 0
        %1301 = vmatpush2.bf16.xpose.msra.mxu0 0
        %1302 = vmatprep.subr.bf16.mxu0 0
        %1303 = vmatpush2.bf16.xpose.msra.mxu0 0
        %1304 = vmatprep.mubr.bf16.mxu0 0
        %1305 = vmatmul.mubr.bf16.gmra.mxu0 %v1267
        %v1306 = vpop.f32.mrf.mxu0
        %v1307 = vadd.f32 0.0, %v1306
        %v1308 = vpop.f32.mrf.mxu0
        %v1309 = vpop.f32.mrf.mxu0
        %v1310 = vpop.f32.mrf.mxu0
        %1311 = vdwg.mxu0
        %v1312 = vsel %vm975, %v1307, -inf
        %1313 = vmax.xlane.f32.xlu0 %v1312
        %v1314 = vpop.xlane.xlu0 %1313
        %v1315 = vsub.f32 %v1307, %v1314
        %v1316 = vmul.f32 %v1315, 1.442695
        %v1317 = vpow.pop %v1316
        %v1318 = vsel %vm975, %v1317, 0.0
        %1319 = vadd.xlane.f32.xlu0 %v1318
        %v1320 = vpop.xlane.xlu0 %1319
        %v1321 = vrcp.pop %v1320
        %v1322 = vmul.f32 %v1317, %v1321
        %v1323 = vpack.c.bf16 %v1322, %v1322
        %1324 = vrot.lane.b32.xlu0 %v1103, 32
        %v1325 = vpop.permute.xlu0 %1324
        %v1327 = vsel %vm975, %v1323, 0
        %v1330 = vsel %vm991, %v1325, 0
        %1332 = vmatprep.subr.bf16.mxu0 0
        %1333 = vmatpush1.bf16.msra.mxu0 0
        %1334 = vmatprep.subr.bf16.mxu0 0
        %1335 = vmatpush1.bf16.msra.mxu0 0
        %1336 = vmatprep.subr.bf16.mxu0 0
        %1337 = vmatpush1.bf16.msra.mxu0 0
        %1338 = vmatprep.subr.bf16.mxu0 0
        %1339 = vmatpush1.bf16.msra.mxu0 0
        %1340 = vmatprep.subr.bf16.mxu0 0
        %1341 = vmatpush1.bf16.msra.mxu0 0
        %1342 = vmatprep.subr.bf16.mxu0 0
        %1343 = vmatpush1.bf16.msra.mxu0 0
        %1344 = vmatprep.subr.bf16.mxu0 0
        %1345 = vmatpush1.bf16.msra.mxu0 0
        %1346 = vmatprep.subr.bf16.mxu0 0
        %1347 = vmatpush1.bf16.msra.mxu0 %v1330
        %1348 = vmatprep.subr.bf16.mxu0 0
        %1349 = vmatpush2.bf16.msra.mxu0 0
        %1350 = vmatprep.subr.bf16.mxu0 0
        %1351 = vmatpush2.bf16.msra.mxu0 0
        %1352 = vmatprep.subr.bf16.mxu0 0
        %1353 = vmatpush2.bf16.msra.mxu0 0
        %1354 = vmatprep.subr.bf16.mxu0 0
        %1355 = vmatpush2.bf16.msra.mxu0 0
        %1356 = vmatprep.subr.bf16.mxu0 0
        %1357 = vmatpush2.bf16.msra.mxu0 0
        %1358 = vmatprep.subr.bf16.mxu0 0
        %1359 = vmatpush2.bf16.msra.mxu0 0
        %1360 = vmatprep.subr.bf16.mxu0 0
        %1361 = vmatpush2.bf16.msra.mxu0 0
        %1362 = vmatprep.subr.bf16.mxu0 0
        %1363 = vmatpush2.bf16.msra.mxu0 0
        %1364 = vmatprep.mubr.bf16.mxu0 0
        %1365 = vmatmul.mubr.bf16.gmra.mxu0 %v1327
        %v1366 = vpop.f32.mrf.mxu0
        %v1367 = vadd.f32 0.0, %v1366
        %v1368 = vpop.f32.mrf.mxu0
        %v1369 = vpop.f32.mrf.mxu0
        %v1370 = vpop.f32.mrf.mxu0
        %1371 = vdwg.mxu0
        %1373 = vrot.lane.b32.xlu0 %v1147, 32
        %v1374 = vpop.permute.xlu0 %1373
        %1377 = vrot.lane.b32.xlu0 %v1257, 64
        %v1378 = vpop.permute.xlu0 %1377
        %1381 = vrot.lane.b32.xlu0 %v1367, 96
        %v1382 = vpop.permute.xlu0 %1381
        %v1384 = vsel %vm928, %v1030, %v1374
        %vm1385 = vcmask 523264
        %v1386 = vsel %vm1385, %v1384, %v1378
        %vm1387 = vcmask 785408
        %v1388 = vsel %vm1387, %v1386, %v1382
        %s1389 = smul.addr %s805, 4
        %s1390 = scalar_lea.vmem [#allocation16], %s1389
        %v1391 = vld [vmem:[%s1390] sm:$0xf]
        %v1392 = vld [vmem:[%s1390 + $0x4] sm:$0xf]
        %v1393 = vld [vmem:[%s1390 + $0x8] sm:$0xf]
        %v1394 = vld [vmem:[%s1390 + $0xc] sm:$0xf]
        %v1395 = vld [vmem:[%s1390 + $0x10] sm:$0xf]
        %v1396 = vld [vmem:[%s1390 + $0x14] sm:$0xf]
        %v1397 = vld [vmem:[%s1390 + $0x18] sm:$0xf]
        %v1398 = vld [vmem:[%s1390 + $0x1c] sm:$0xf]
        %v1399 = vld [vmem:[%s1390 + $0x20] sm:$0xf]
        %v1400 = vld [vmem:[%s1390 + $0x24] sm:$0xf]
        %v1401 = vld [vmem:[%s1390 + $0x28] sm:$0xf]
        %v1402 = vld [vmem:[%s1390 + $0x2c] sm:$0xf]
        %v1403 = vld [vmem:[%s1390 + $0x30] sm:$0xf]
        %v1404 = vld [vmem:[%s1390 + $0x34] sm:$0xf]
        %v1405 = vld [vmem:[%s1390 + $0x38] sm:$0xf]
        %v1406 = vld [vmem:[%s1390 + $0x3c] sm:$0xf]
        %v1407 = vld [vmem:[#allocation2] sm:$0xff]
        %v1408 = vpack.c.bf16 %v1388, %v1388
        %v1425 = vunpack.c.l.b16 %v1391
        %v1426 = vunpack.c.l.b16 %v1392
        %v1427 = vunpack.c.l.b16 %v1393
        %v1428 = vunpack.c.l.b16 %v1394
        %v1429 = vunpack.c.l.b16 %v1395
        %v1430 = vunpack.c.l.b16 %v1396
        %v1431 = vunpack.c.l.b16 %v1397
        %v1432 = vunpack.c.l.b16 %v1398
        %v1433 = vunpack.c.l.b16 %v1399
        %v1434 = vunpack.c.l.b16 %v1400
        %v1435 = vunpack.c.l.b16 %v1401
        %v1436 = vunpack.c.l.b16 %v1402
        %v1437 = vunpack.c.l.b16 %v1403
        %v1438 = vunpack.c.l.b16 %v1404
        %v1439 = vunpack.c.l.b16 %v1405
        %v1440 = vunpack.c.l.b16 %v1406
        %v1441 = vpack.c.b16 %v1426, %v1425
        %v1442 = vpack.c.b16 %v1428, %v1427
        %v1443 = vpack.c.b16 %v1430, %v1429
        %v1444 = vpack.c.b16 %v1432, %v1431
        %v1445 = vpack.c.b16 %v1434, %v1433
        %v1446 = vpack.c.b16 %v1436, %v1435
        %v1447 = vpack.c.b16 %v1438, %v1437
        %v1448 = vpack.c.b16 %v1440, %v1439
        %1457 = vmatprep.subr.bf16.mxu0 0
        %1458 = vmatpush1.bf16.msra.mxu0 %v1448
        %1459 = vmatprep.subr.bf16.mxu0 0
        %1460 = vmatpush1.bf16.msra.mxu0 %v1447
        %1461 = vmatprep.subr.bf16.mxu0 0
        %1462 = vmatpush1.bf16.msra.mxu0 %v1446
        %1463 = vmatprep.subr.bf16.mxu0 0
        %1464 = vmatpush1.bf16.msra.mxu0 %v1445
        %1465 = vmatprep.subr.bf16.mxu0 0
        %1466 = vmatpush1.bf16.msra.mxu0 %v1444
        %1467 = vmatprep.subr.bf16.mxu0 0
        %1468 = vmatpush1.bf16.msra.mxu0 %v1443
        %1469 = vmatprep.subr.bf16.mxu0 0
        %1470 = vmatpush1.bf16.msra.mxu0 %v1442
        %1471 = vmatprep.subr.bf16.mxu0 0
        %1472 = vmatpush1.bf16.msra.mxu0 %v1441
        %1473 = vmatprep.subr.bf16.mxu0 0
        %1474 = vmatpush2.bf16.msra.mxu0 0
        %1475 = vmatprep.subr.bf16.mxu0 0
        %1476 = vmatpush2.bf16.msra.mxu0 0
        %1477 = vmatprep.subr.bf16.mxu0 0
        %1478 = vmatpush2.bf16.msra.mxu0 0
        %1479 = vmatprep.subr.bf16.mxu0 0
        %1480 = vmatpush2.bf16.msra.mxu0 0
        %1481 = vmatprep.subr.bf16.mxu0 0
        %1482 = vmatpush2.bf16.msra.mxu0 0
        %1483 = vmatprep.subr.bf16.mxu0 0
        %1484 = vmatpush2.bf16.msra.mxu0 0
        %1485 = vmatprep.subr.bf16.mxu0 0
        %1486 = vmatpush2.bf16.msra.mxu0 0
        %1487 = vmatprep.subr.bf16.mxu0 0
        %1488 = vmatpush2.bf16.msra.mxu0 0
        %1489 = vmatprep.mubr.bf16.mxu0 0
        %1490 = vmatmul.mubr.bf16.gmra.mxu0 %v1408
        %v1491 = vpop.f32.mrf.mxu0
        %v1492 = vadd.f32 0.0, %v1491
        %v1493 = vpop.f32.mrf.mxu0
        %v1494 = vpop.f32.mrf.mxu0
        %v1495 = vpop.f32.mrf.mxu0
        %1496 = vdwg.mxu0
        %v1497 = vadd.f32 %v1407, %v1492
        %1498 = vst [vmem:[#allocation2] sm:$0xff] %v1497
        // Predicated region
        $region101: #{tpu_custom_call.1} parent=63 // pred_check
          %p1499 = pneg %p556
        $region102: #{tpu_custom_call.1} parent=63 // pred_check_branch
          %1501 = sbr.rel (%p1499) target = $region104
        $region103: #{tpu_custom_call.1} parent=63 // pred_region
          %v1502 = vld [vmem:[#allocation2] sm:$0xff]
          %v1503 = vld [vmem:[%s10] sm:$0x1]
          %v1505 = vlaneseq
          %v1506 = vshrl.u32 %v1505, 7
          %v1507 = vsub.s32 0, %v1506
          %v1508 = vrot.slane %v1503, %v1507
          %v1510 = vadd.f32 %v1502, %v1508
          %1511 = vst [vmem:[%s554] sm:$0xff] %v1510
        $region104: #{tpu_custom_call.1} parent=63 // pred_fallthru
          _
        %s1512 = sand.u32 %s310, 1
        %s1513 = scalar_lea.sflag [#allocation7], %s1512
        %s1514 = sand.u32 %s310, 1
        %s1515 = smul.addr %s1514, 8
        %s1516 = scalar_lea.vmem [#allocation17], %s1515
        // Predicated region
        $region105: #{tpu_custom_call.1} parent=63 // pred_check
          %p1517 = pneg %p320
        $region106: #{tpu_custom_call.1} parent=63 // pred_check_branch
          %1519 = sbr.rel (%p1517) target = $region108
        $region107: #{tpu_custom_call.1} parent=63 // pred_region
          %s1521 = ssub.s32 128, 128
          %1522 = vsyncadd %s1513, %s1521
          %s1523 = sadd.s32 %s39, %s38
          %s1524 = smul.addr %s1523, 128
          %s1525 = scalar_lea.hbm %s11, %s1524
          %s1527 = sshll.u32 %s1516, 4
          %s1528 = int_to_ptr.vmem [resolvable:$true] %s1527
          %1530 = dma.vmem_to_hbm [thread:$0]  %s1528, 128, %s1525, %s1513
        $region108: #{tpu_custom_call.1} parent=63 // pred_fallthru
          _
      $region64: #{tpu_custom_call.1} parent=5 // pred_fallthru
        _
      %p1531 = scmp.le.s32.totalorder 2, %s28
      // Predicated region
      $region109: #{tpu_custom_call.1} parent=5 // pred_check
        %p1532 = pneg %p1531
      $region110: #{tpu_custom_call.1} parent=5 // pred_check_branch
        %1534 = sbr.rel (%p1532) target = $region112
      $region111: #{tpu_custom_call.1} parent=5 // pred_region
        %s1535 = ssub.s32 %s28, 2
        // Predicated region
        $region113: #{tpu_custom_call.1} parent=111 // pred_check
          %p1536 = pneg %p326
        $region114: #{tpu_custom_call.1} parent=111 // pred_check_branch
          %1538 = sbr.rel (%p1536) target = $region116
        $region115: #{tpu_custom_call.1} parent=111 // pred_region
          %s1539 = sand.u32 %s311, 1
          %s1540 = scalar_lea.sflag [#allocation7], %s1539
          %s1541 = sand.u32 %s311, 1
          %s1542 = smul.addr %s1541, 8
          %s1543 = scalar_lea.vmem [#allocation17], %s1542
          %1544 = dma.done %s1540, 128
        $region116: #{tpu_custom_call.1} parent=111 // pred_fallthru
          _
      $region112: #{tpu_custom_call.1} parent=5 // pred_fallthru
        _
    $region6: #{tpu_custom_call.1} parent=1 // loop_footer
      %s32 = sadd.s32 1, %s28
    $region7: #{tpu_custom_call.1} parent=1 // loop_footer_branch
      %27 = sbr.rel target = $region3
    $region8: #{tpu_custom_call.1} parent=1 // loop_exit
      _
    %1545 = vsyncpa [#allocation6], 1
    %s1546 = scalar_lea.sflag [#allocation6], 1
    %1547 = vsyncpa %s1546, 1
    %1548 = vsyncpa [#allocation9], 1
    %s1549 = scalar_lea.sflag [#allocation9], 1
    %1550 = vsyncpa %s1549, 1
    %1551 = vsyncpa [#allocation12], 1
    %1552 = vsyncpa [#allocation15], 1
    %1553 = vsyncpa [#allocation7], 1
    %s1554 = scalar_lea.sflag [#allocation7], 1
    %1555 = vsyncpa %s1554, 1

</llo_original>
